<compile_context>
chip_gen: v7x
topology: tpu7x:2x2x1
jax: 0.10.0
libtpu: 0.0.40
codegen_flags: <defaults>
</compile_context>

<pallas_src>
import jax
import jax.numpy as jnp
from jax import lax
from jax.experimental import pallas as pl
from jax.experimental.pallas import tpu as pltpu

C_OUT = 11        # conv output channels
K = 3             # conv kernel size
N_CLASSES = 2     # dense output features
RB = 8            # batch rows (sublanes) processed per inner-loop step
MAX_B_TILE = 256  # batch rows per grid step (multiple of RB)


def _round_up(a, m):
    return ((a + m - 1) // m) * m


def cnn_kernel(x_ref, w_ref, b_ref, wd_ref, bd_ref, out_ref):
    # x_ref  : (B_TILE, N)          f32 VMEM  -- batch on sublanes, time on lanes
    # w_ref  : (K, C_OUT)           f32 SMEM  -- conv weight (transposed from torch (C_OUT,1,K))
    # b_ref  : (C_OUT,)             f32 SMEM  -- conv bias
    # wd_ref : (N_CLASSES, C_OUT)   f32 SMEM  -- dense weight (torch layout)
    # bd_ref : (N_CLASSES,)         f32 SMEM  -- dense bias
    # out_ref: (B_TILE, N_CLASSES)  f32 VMEM
    bt, n = x_ref.shape
    l = n - (K - 1)          # conv output length == MaxPool window
    num_rb = bt // RB

    # Hoist all scalar parameter reads (SMEM -> sregs) out of the row-block loop.
    w = [[w_ref[k, c] for c in range(C_OUT)] for k in range(K)]
    cb = [b_ref[c] for c in range(C_OUT)]
    wd = [[wd_ref[j, c] for c in range(C_OUT)] for j in range(N_CLASSES)]
    bd = [bd_ref[j] for j in range(N_CLASSES)]

    def row_block(r, carry):
        r0 = pl.multiple_of(r * RB, RB)
        xb = x_ref[pl.ds(r0, RB), :]          # (RB, N): loaded once, reused by all channels
        x0 = xb[:, 0:l]                       # (RB, L) conv taps (lane-offset slices)
        x1 = xb[:, 1:1 + l]
        x2 = xb[:, 2:2 + l]

        # Dense-layer accumulators, initialized with the dense bias.
        acc0 = jnp.full((RB, 1), bd[0], dtype=jnp.float32)
        acc1 = jnp.full((RB, 1), bd[1], dtype=jnp.float32)

        # Static unroll over the 11 conv output channels.
        for c in range(C_OUT):
            conv_c = w[0][c] * x0 + w[1][c] * x1 + w[2][c] * x2   # (RB, L), no per-elem bias
            m_c = jnp.max(conv_c, axis=1, keepdims=True)          # (RB, 1) global max pool
            pooled_c = jnp.maximum(m_c + cb[c], 0.0)              # bias + ReLU hoisted (exact)
            acc0 = acc0 + wd[0][c] * pooled_c                     # Linear(11, 2)
            acc1 = acc1 + wd[1][c] * pooled_c

        out_ref[pl.ds(r0, RB), 0:1] = acc0
        out_ref[pl.ds(r0, RB), 1:2] = acc1
        return carry

    lax.fori_loop(0, num_rb, row_block, 0, unroll=True)


def cnn_forward(x, conv_w, conv_b, dense_w, dense_b):
    """x: (B, N, 1) float32 (same as the PyTorch module input with flip=True)."""
    B, N, _ = x.shape
    # flip=True + single input channel: the conv just runs along the N axis.
    # Consume (B, N) directly -- no HBM transpose pass.
    x2d = x[:, :, 0].astype(jnp.float32)                               # (B, N)

    # Batch tiling over the sublane axis.
    b_tile = min(MAX_B_TILE, _round_up(B, RB))
    b_pad = _round_up(B, b_tile)
    if b_pad != B:
        x2d = jnp.pad(x2d, ((0, b_pad - B), (0, 0)))

    w_kc = jnp.transpose(conv_w[:, 0, :], (1, 0)).astype(jnp.float32)  # (K, C_OUT), tiny

    out = pl.pallas_call(
        cnn_kernel,
        out_shape=jax.ShapeDtypeStruct((b_pad, N_CLASSES), jnp.float32),
        grid=(b_pad // b_tile,),
        in_specs=[
            pl.BlockSpec((b_tile, N), lambda i: (i, 0)),               # x tile -> VMEM
            pl.BlockSpec(memory_space=pltpu.MemorySpace.SMEM),         # conv weight
            pl.BlockSpec(memory_space=pltpu.MemorySpace.SMEM),         # conv bias
            pl.BlockSpec(memory_space=pltpu.MemorySpace.SMEM),         # dense weight
            pl.BlockSpec(memory_space=pltpu.MemorySpace.SMEM),         # dense bias
        ],
        out_specs=pl.BlockSpec((b_tile, N_CLASSES), lambda i: (i, 0)),
        compiler_params=pltpu.CompilerParams(
            dimension_semantics=("parallel",)),
    )(x2d, w_kc, conv_b.astype(jnp.float32),
      dense_w.astype(jnp.float32), dense_b.astype(jnp.float32))

    return out[:B]                                                     # (B, 2)


def reference_forward(x, conv_w, conv_b, dense_w, dense_b):
    """Plain-JAX reference matching the PyTorch forward exactly."""
    xt = jnp.transpose(x, (0, 2, 1))[:, 0, :]                          # (B, N)
    L = xt.shape[1] - K + 1
    patches = jnp.stack([xt[:, k:k + L] for k in range(K)], axis=-1)   # (B, L, K)
    conv = jnp.einsum("blk,ck->blc", patches, conv_w[:, 0, :]) + conv_b
    act = jnp.maximum(conv, 0.0)
    pooled = jnp.max(act, axis=1)                                      # (B, C_OUT)
    return pooled @ dense_w.T + dense_b                                # (B, 2)


if __name__ == "__main__":
    B, N = 20, 16   # small shapes; module default N=200, N=16 here for the demo

    key = jax.random.PRNGKey(0)
    k_x, k_cw, k_cb, k_dw, k_db = jax.random.split(key, 5)

    # Deterministic parameter init (PyTorch-style uniform(-1/sqrt(fan_in), 1/sqrt(fan_in))).
    conv_bound = 1.0 / jnp.sqrt(1.0 * K)
    dense_bound = 1.0 / jnp.sqrt(1.0 * C_OUT)
    conv_w = jax.random.uniform(k_cw, (C_OUT, 1, K), jnp.float32, -conv_bound, conv_bound)
    conv_b = jax.random.uniform(k_cb, (C_OUT,), jnp.float32, -conv_bound, conv_bound)
    dense_w = jax.random.uniform(k_dw, (N_CLASSES, C_OUT), jnp.float32, -dense_bound, dense_bound)
    dense_b = jax.random.uniform(k_db, (N_CLASSES,), jnp.float32, -dense_bound, dense_bound)

    # Input like the PyTorch module expects with flip=True: (B, N, 1).
    x = jax.random.normal(k_x, (B, N, 1), jnp.float32)

    out = jax.block_until_ready(cnn_forward(x, conv_w, conv_b, dense_w, dense_b))
    ref = jax.block_until_ready(reference_forward(x, conv_w, conv_b, dense_w, dense_b))

    assert out.shape == (B, N_CLASSES), out.shape
    assert jnp.allclose(out, ref, atol=1e-5, rtol=1e-5), (out, ref)
    print("KERNEL_OK")
</pallas_src>

<mosaic_0001>
module attributes {stable_mosaic.version = 11 : i64} {
  func.func @cnn_kernel(%arg0: i32, %arg1: memref<24x16xf32, #tpu.memory_space<vmem>>, %arg2: memref<3x11xf32, #tpu.memory_space<smem>>, %arg3: memref<11xf32, #tpu.memory_space<smem>>, %arg4: memref<2x11xf32, #tpu.memory_space<smem>>, %arg5: memref<2xf32, #tpu.memory_space<smem>>, %arg6: memref<24x2xf32, #tpu.memory_space<vmem>>) attributes {dimension_semantics = [#tpu.dimension_semantics<parallel>], iteration_bounds = array<i64: 1>, scalar_prefetch = 0 : i64, scratch_operands = 0 : i64, tpu.core_type = #tpu.core_type<tc>, window_params = [{transform_indices = @transform_0, window_bounds = array<i64: 24, 16>}, {transform_indices = @transform_1, window_bounds = array<i64: 3, 11>}, {transform_indices = @transform_2, window_bounds = array<i64: 11>}, {transform_indices = @transform_3, window_bounds = array<i64: 2, 11>}, {transform_indices = @transform_4, window_bounds = array<i64: 2>}, {transform_indices = @transform_5, window_bounds = array<i64: 24, 2>}]} {
    %c0 = arith.constant 0 : index
    %c0_0 = arith.constant 0 : index
    %0 = memref.load %arg2[%c0, %c0_0] : memref<3x11xf32, #tpu.memory_space<smem>>
    %c0_1 = arith.constant 0 : index
    %c1 = arith.constant 1 : index
    %1 = memref.load %arg2[%c0_1, %c1] : memref<3x11xf32, #tpu.memory_space<smem>>
    %c0_2 = arith.constant 0 : index
    %c2 = arith.constant 2 : index
    %2 = memref.load %arg2[%c0_2, %c2] : memref<3x11xf32, #tpu.memory_space<smem>>
    %c0_3 = arith.constant 0 : index
    %c3 = arith.constant 3 : index
    %3 = memref.load %arg2[%c0_3, %c3] : memref<3x11xf32, #tpu.memory_space<smem>>
    %c0_4 = arith.constant 0 : index
    %c4 = arith.constant 4 : index
    %4 = memref.load %arg2[%c0_4, %c4] : memref<3x11xf32, #tpu.memory_space<smem>>
    %c0_5 = arith.constant 0 : index
    %c5 = arith.constant 5 : index
    %5 = memref.load %arg2[%c0_5, %c5] : memref<3x11xf32, #tpu.memory_space<smem>>
    %c0_6 = arith.constant 0 : index
    %c6 = arith.constant 6 : index
    %6 = memref.load %arg2[%c0_6, %c6] : memref<3x11xf32, #tpu.memory_space<smem>>
    %c0_7 = arith.constant 0 : index
    %c7 = arith.constant 7 : index
    %7 = memref.load %arg2[%c0_7, %c7] : memref<3x11xf32, #tpu.memory_space<smem>>
    %c0_8 = arith.constant 0 : index
    %c8 = arith.constant 8 : index
    %8 = memref.load %arg2[%c0_8, %c8] : memref<3x11xf32, #tpu.memory_space<smem>>
    %c0_9 = arith.constant 0 : index
    %c9 = arith.constant 9 : index
    %9 = memref.load %arg2[%c0_9, %c9] : memref<3x11xf32, #tpu.memory_space<smem>>
    %c0_10 = arith.constant 0 : index
    %c10 = arith.constant 10 : index
    %10 = memref.load %arg2[%c0_10, %c10] : memref<3x11xf32, #tpu.memory_space<smem>>
    %c1_11 = arith.constant 1 : index
    %c0_12 = arith.constant 0 : index
    %11 = memref.load %arg2[%c1_11, %c0_12] : memref<3x11xf32, #tpu.memory_space<smem>>
    %c1_13 = arith.constant 1 : index
    %c1_14 = arith.constant 1 : index
    %12 = memref.load %arg2[%c1_13, %c1_14] : memref<3x11xf32, #tpu.memory_space<smem>>
    %c1_15 = arith.constant 1 : index
    %c2_16 = arith.constant 2 : index
    %13 = memref.load %arg2[%c1_15, %c2_16] : memref<3x11xf32, #tpu.memory_space<smem>>
    %c1_17 = arith.constant 1 : index
    %c3_18 = arith.constant 3 : index
    %14 = memref.load %arg2[%c1_17, %c3_18] : memref<3x11xf32, #tpu.memory_space<smem>>
    %c1_19 = arith.constant 1 : index
    %c4_20 = arith.constant 4 : index
    %15 = memref.load %arg2[%c1_19, %c4_20] : memref<3x11xf32, #tpu.memory_space<smem>>
    %c1_21 = arith.constant 1 : index
    %c5_22 = arith.constant 5 : index
    %16 = memref.load %arg2[%c1_21, %c5_22] : memref<3x11xf32, #tpu.memory_space<smem>>
    %c1_23 = arith.constant 1 : index
    %c6_24 = arith.constant 6 : index
    %17 = memref.load %arg2[%c1_23, %c6_24] : memref<3x11xf32, #tpu.memory_space<smem>>
    %c1_25 = arith.constant 1 : index
    %c7_26 = arith.constant 7 : index
    %18 = memref.load %arg2[%c1_25, %c7_26] : memref<3x11xf32, #tpu.memory_space<smem>>
    %c1_27 = arith.constant 1 : index
    %c8_28 = arith.constant 8 : index
    %19 = memref.load %arg2[%c1_27, %c8_28] : memref<3x11xf32, #tpu.memory_space<smem>>
    %c1_29 = arith.constant 1 : index
    %c9_30 = arith.constant 9 : index
    %20 = memref.load %arg2[%c1_29, %c9_30] : memref<3x11xf32, #tpu.memory_space<smem>>
    %c1_31 = arith.constant 1 : index
    %c10_32 = arith.constant 10 : index
    %21 = memref.load %arg2[%c1_31, %c10_32] : memref<3x11xf32, #tpu.memory_space<smem>>
    %c2_33 = arith.constant 2 : index
    %c0_34 = arith.constant 0 : index
    %22 = memref.load %arg2[%c2_33, %c0_34] : memref<3x11xf32, #tpu.memory_space<smem>>
    %c2_35 = arith.constant 2 : index
    %c1_36 = arith.constant 1 : index
    %23 = memref.load %arg2[%c2_35, %c1_36] : memref<3x11xf32, #tpu.memory_space<smem>>
    %c2_37 = arith.constant 2 : index
    %c2_38 = arith.constant 2 : index
    %24 = memref.load %arg2[%c2_37, %c2_38] : memref<3x11xf32, #tpu.memory_space<smem>>
    %c2_39 = arith.constant 2 : index
    %c3_40 = arith.constant 3 : index
    %25 = memref.load %arg2[%c2_39, %c3_40] : memref<3x11xf32, #tpu.memory_space<smem>>
    %c2_41 = arith.constant 2 : index
    %c4_42 = arith.constant 4 : index
    %26 = memref.load %arg2[%c2_41, %c4_42] : memref<3x11xf32, #tpu.memory_space<smem>>
    %c2_43 = arith.constant 2 : index
    %c5_44 = arith.constant 5 : index
    %27 = memref.load %arg2[%c2_43, %c5_44] : memref<3x11xf32, #tpu.memory_space<smem>>
    %c2_45 = arith.constant 2 : index
    %c6_46 = arith.constant 6 : index
    %28 = memref.load %arg2[%c2_45, %c6_46] : memref<3x11xf32, #tpu.memory_space<smem>>
    %c2_47 = arith.constant 2 : index
    %c7_48 = arith.constant 7 : index
    %29 = memref.load %arg2[%c2_47, %c7_48] : memref<3x11xf32, #tpu.memory_space<smem>>
    %c2_49 = arith.constant 2 : index
    %c8_50 = arith.constant 8 : index
    %30 = memref.load %arg2[%c2_49, %c8_50] : memref<3x11xf32, #tpu.memory_space<smem>>
    %c2_51 = arith.constant 2 : index
    %c9_52 = arith.constant 9 : index
    %31 = memref.load %arg2[%c2_51, %c9_52] : memref<3x11xf32, #tpu.memory_space<smem>>
    %c2_53 = arith.constant 2 : index
    %c10_54 = arith.constant 10 : index
    %32 = memref.load %arg2[%c2_53, %c10_54] : memref<3x11xf32, #tpu.memory_space<smem>>
    %c0_55 = arith.constant 0 : index
    %33 = memref.load %arg3[%c0_55] : memref<11xf32, #tpu.memory_space<smem>>
    %c1_56 = arith.constant 1 : index
    %34 = memref.load %arg3[%c1_56] : memref<11xf32, #tpu.memory_space<smem>>
    %c2_57 = arith.constant 2 : index
    %35 = memref.load %arg3[%c2_57] : memref<11xf32, #tpu.memory_space<smem>>
    %c3_58 = arith.constant 3 : index
    %36 = memref.load %arg3[%c3_58] : memref<11xf32, #tpu.memory_space<smem>>
    %c4_59 = arith.constant 4 : index
    %37 = memref.load %arg3[%c4_59] : memref<11xf32, #tpu.memory_space<smem>>
    %c5_60 = arith.constant 5 : index
    %38 = memref.load %arg3[%c5_60] : memref<11xf32, #tpu.memory_space<smem>>
    %c6_61 = arith.constant 6 : index
    %39 = memref.load %arg3[%c6_61] : memref<11xf32, #tpu.memory_space<smem>>
    %c7_62 = arith.constant 7 : index
    %40 = memref.load %arg3[%c7_62] : memref<11xf32, #tpu.memory_space<smem>>
    %c8_63 = arith.constant 8 : index
    %41 = memref.load %arg3[%c8_63] : memref<11xf32, #tpu.memory_space<smem>>
    %c9_64 = arith.constant 9 : index
    %42 = memref.load %arg3[%c9_64] : memref<11xf32, #tpu.memory_space<smem>>
    %c10_65 = arith.constant 10 : index
    %43 = memref.load %arg3[%c10_65] : memref<11xf32, #tpu.memory_space<smem>>
    %c0_66 = arith.constant 0 : index
    %c0_67 = arith.constant 0 : index
    %44 = memref.load %arg4[%c0_66, %c0_67] : memref<2x11xf32, #tpu.memory_space<smem>>
    %c0_68 = arith.constant 0 : index
    %c1_69 = arith.constant 1 : index
    %45 = memref.load %arg4[%c0_68, %c1_69] : memref<2x11xf32, #tpu.memory_space<smem>>
    %c0_70 = arith.constant 0 : index
    %c2_71 = arith.constant 2 : index
    %46 = memref.load %arg4[%c0_70, %c2_71] : memref<2x11xf32, #tpu.memory_space<smem>>
    %c0_72 = arith.constant 0 : index
    %c3_73 = arith.constant 3 : index
    %47 = memref.load %arg4[%c0_72, %c3_73] : memref<2x11xf32, #tpu.memory_space<smem>>
    %c0_74 = arith.constant 0 : index
    %c4_75 = arith.constant 4 : index
    %48 = memref.load %arg4[%c0_74, %c4_75] : memref<2x11xf32, #tpu.memory_space<smem>>
    %c0_76 = arith.constant 0 : index
    %c5_77 = arith.constant 5 : index
    %49 = memref.load %arg4[%c0_76, %c5_77] : memref<2x11xf32, #tpu.memory_space<smem>>
    %c0_78 = arith.constant 0 : index
    %c6_79 = arith.constant 6 : index
    %50 = memref.load %arg4[%c0_78, %c6_79] : memref<2x11xf32, #tpu.memory_space<smem>>
    %c0_80 = arith.constant 0 : index
    %c7_81 = arith.constant 7 : index
    %51 = memref.load %arg4[%c0_80, %c7_81] : memref<2x11xf32, #tpu.memory_space<smem>>
    %c0_82 = arith.constant 0 : index
    %c8_83 = arith.constant 8 : index
    %52 = memref.load %arg4[%c0_82, %c8_83] : memref<2x11xf32, #tpu.memory_space<smem>>
    %c0_84 = arith.constant 0 : index
    %c9_85 = arith.constant 9 : index
    %53 = memref.load %arg4[%c0_84, %c9_85] : memref<2x11xf32, #tpu.memory_space<smem>>
    %c0_86 = arith.constant 0 : index
    %c10_87 = arith.constant 10 : index
    %54 = memref.load %arg4[%c0_86, %c10_87] : memref<2x11xf32, #tpu.memory_space<smem>>
    %c1_88 = arith.constant 1 : index
    %c0_89 = arith.constant 0 : index
    %55 = memref.load %arg4[%c1_88, %c0_89] : memref<2x11xf32, #tpu.memory_space<smem>>
    %c1_90 = arith.constant 1 : index
    %c1_91 = arith.constant 1 : index
    %56 = memref.load %arg4[%c1_90, %c1_91] : memref<2x11xf32, #tpu.memory_space<smem>>
    %c1_92 = arith.constant 1 : index
    %c2_93 = arith.constant 2 : index
    %57 = memref.load %arg4[%c1_92, %c2_93] : memref<2x11xf32, #tpu.memory_space<smem>>
    %c1_94 = arith.constant 1 : index
    %c3_95 = arith.constant 3 : index
    %58 = memref.load %arg4[%c1_94, %c3_95] : memref<2x11xf32, #tpu.memory_space<smem>>
    %c1_96 = arith.constant 1 : index
    %c4_97 = arith.constant 4 : index
    %59 = memref.load %arg4[%c1_96, %c4_97] : memref<2x11xf32, #tpu.memory_space<smem>>
    %c1_98 = arith.constant 1 : index
    %c5_99 = arith.constant 5 : index
    %60 = memref.load %arg4[%c1_98, %c5_99] : memref<2x11xf32, #tpu.memory_space<smem>>
    %c1_100 = arith.constant 1 : index
    %c6_101 = arith.constant 6 : index
    %61 = memref.load %arg4[%c1_100, %c6_101] : memref<2x11xf32, #tpu.memory_space<smem>>
    %c1_102 = arith.constant 1 : index
    %c7_103 = arith.constant 7 : index
    %62 = memref.load %arg4[%c1_102, %c7_103] : memref<2x11xf32, #tpu.memory_space<smem>>
    %c1_104 = arith.constant 1 : index
    %c8_105 = arith.constant 8 : index
    %63 = memref.load %arg4[%c1_104, %c8_105] : memref<2x11xf32, #tpu.memory_space<smem>>
    %c1_106 = arith.constant 1 : index
    %c9_107 = arith.constant 9 : index
    %64 = memref.load %arg4[%c1_106, %c9_107] : memref<2x11xf32, #tpu.memory_space<smem>>
    %c1_108 = arith.constant 1 : index
    %c10_109 = arith.constant 10 : index
    %65 = memref.load %arg4[%c1_108, %c10_109] : memref<2x11xf32, #tpu.memory_space<smem>>
    %c0_110 = arith.constant 0 : index
    %66 = memref.load %arg5[%c0_110] : memref<2xf32, #tpu.memory_space<smem>>
    %c1_111 = arith.constant 1 : index
    %67 = memref.load %arg5[%c1_111] : memref<2xf32, #tpu.memory_space<smem>>
    %c0_i32 = arith.constant 0 : i32
    %c8_i32 = arith.constant 8 : i32
    %68 = arith.muli %c0_i32, %c8_i32 : i32
    %69 = tpu.assume_multiple %68, 8 : i32
    %70 = arith.index_cast %69 : i32 to index
    %c0_112 = arith.constant 0 : index
    %71 = vector.load %arg1[%70, %c0_112] : memref<24x16xf32, #tpu.memory_space<vmem>>, vector<8x16xf32>
    %72 = vector.extract_strided_slice %71 {offsets = [0, 0], sizes = [8, 14], strides = [1, 1]} : vector<8x16xf32> to vector<8x14xf32>
    %73 = vector.extract_strided_slice %71 {offsets = [0, 1], sizes = [8, 14], strides = [1, 1]} : vector<8x16xf32> to vector<8x14xf32>
    %74 = vector.extract_strided_slice %71 {offsets = [0, 2], sizes = [8, 14], strides = [1, 1]} : vector<8x16xf32> to vector<8x14xf32>
    %75 = vector.broadcast %66 : f32 to vector<8x1xf32>
    %76 = vector.broadcast %67 : f32 to vector<8x1xf32>
    %77 = vector.broadcast %0 : f32 to vector<8x14xf32>
    %78 = arith.mulf %77, %72 : vector<8x14xf32>
    %79 = vector.broadcast %11 : f32 to vector<8x14xf32>
    %80 = arith.mulf %79, %73 : vector<8x14xf32>
    %81 = arith.addf %78, %80 : vector<8x14xf32>
    %82 = vector.broadcast %22 : f32 to vector<8x14xf32>
    %83 = arith.mulf %82, %74 : vector<8x14xf32>
    %84 = arith.addf %81, %83 : vector<8x14xf32>
    %cst = arith.constant dense<0xFF800000> : vector<8xf32>
    %85 = vector.multi_reduction <maximumf>, %84, %cst [1] : vector<8x14xf32> to vector<8xf32>
    %86 = vector.shape_cast %85 : vector<8xf32> to vector<8x1xf32>
    %87 = vector.broadcast %33 : f32 to vector<8x1xf32>
    %88 = arith.addf %86, %87 : vector<8x1xf32>
    %cst_113 = arith.constant 0.000000e+00 : f32
    %89 = vector.broadcast %cst_113 : f32 to vector<8x1xf32>
    %90 = arith.maximumf %88, %89 : vector<8x1xf32>
    %91 = vector.broadcast %44 : f32 to vector<8x1xf32>
    %92 = arith.mulf %91, %90 : vector<8x1xf32>
    %93 = arith.addf %75, %92 : vector<8x1xf32>
    %94 = vector.broadcast %55 : f32 to vector<8x1xf32>
    %95 = arith.mulf %94, %90 : vector<8x1xf32>
    %96 = arith.addf %76, %95 : vector<8x1xf32>
    %97 = vector.broadcast %1 : f32 to vector<8x14xf32>
    %98 = arith.mulf %97, %72 : vector<8x14xf32>
    %99 = vector.broadcast %12 : f32 to vector<8x14xf32>
    %100 = arith.mulf %99, %73 : vector<8x14xf32>
    %101 = arith.addf %98, %100 : vector<8x14xf32>
    %102 = vector.broadcast %23 : f32 to vector<8x14xf32>
    %103 = arith.mulf %102, %74 : vector<8x14xf32>
    %104 = arith.addf %101, %103 : vector<8x14xf32>
    %cst_114 = arith.constant dense<0xFF800000> : vector<8xf32>
    %105 = vector.multi_reduction <maximumf>, %104, %cst_114 [1] : vector<8x14xf32> to vector<8xf32>
    %106 = vector.shape_cast %105 : vector<8xf32> to vector<8x1xf32>
    %107 = vector.broadcast %34 : f32 to vector<8x1xf32>
    %108 = arith.addf %106, %107 : vector<8x1xf32>
    %cst_115 = arith.constant 0.000000e+00 : f32
    %109 = vector.broadcast %cst_115 : f32 to vector<8x1xf32>
    %110 = arith.maximumf %108, %109 : vector<8x1xf32>
    %111 = vector.broadcast %45 : f32 to vector<8x1xf32>
    %112 = arith.mulf %111, %110 : vector<8x1xf32>
    %113 = arith.addf %93, %112 : vector<8x1xf32>
    %114 = vector.broadcast %56 : f32 to vector<8x1xf32>
    %115 = arith.mulf %114, %110 : vector<8x1xf32>
    %116 = arith.addf %96, %115 : vector<8x1xf32>
    %117 = vector.broadcast %2 : f32 to vector<8x14xf32>
    %118 = arith.mulf %117, %72 : vector<8x14xf32>
    %119 = vector.broadcast %13 : f32 to vector<8x14xf32>
    %120 = arith.mulf %119, %73 : vector<8x14xf32>
    %121 = arith.addf %118, %120 : vector<8x14xf32>
    %122 = vector.broadcast %24 : f32 to vector<8x14xf32>
    %123 = arith.mulf %122, %74 : vector<8x14xf32>
    %124 = arith.addf %121, %123 : vector<8x14xf32>
    %cst_116 = arith.constant dense<0xFF800000> : vector<8xf32>
    %125 = vector.multi_reduction <maximumf>, %124, %cst_116 [1] : vector<8x14xf32> to vector<8xf32>
    %126 = vector.shape_cast %125 : vector<8xf32> to vector<8x1xf32>
    %127 = vector.broadcast %35 : f32 to vector<8x1xf32>
    %128 = arith.addf %126, %127 : vector<8x1xf32>
    %cst_117 = arith.constant 0.000000e+00 : f32
    %129 = vector.broadcast %cst_117 : f32 to vector<8x1xf32>
    %130 = arith.maximumf %128, %129 : vector<8x1xf32>
    %131 = vector.broadcast %46 : f32 to vector<8x1xf32>
    %132 = arith.mulf %131, %130 : vector<8x1xf32>
    %133 = arith.addf %113, %132 : vector<8x1xf32>
    %134 = vector.broadcast %57 : f32 to vector<8x1xf32>
    %135 = arith.mulf %134, %130 : vector<8x1xf32>
    %136 = arith.addf %116, %135 : vector<8x1xf32>
    %137 = vector.broadcast %3 : f32 to vector<8x14xf32>
    %138 = arith.mulf %137, %72 : vector<8x14xf32>
    %139 = vector.broadcast %14 : f32 to vector<8x14xf32>
    %140 = arith.mulf %139, %73 : vector<8x14xf32>
    %141 = arith.addf %138, %140 : vector<8x14xf32>
    %142 = vector.broadcast %25 : f32 to vector<8x14xf32>
    %143 = arith.mulf %142, %74 : vector<8x14xf32>
    %144 = arith.addf %141, %143 : vector<8x14xf32>
    %cst_118 = arith.constant dense<0xFF800000> : vector<8xf32>
    %145 = vector.multi_reduction <maximumf>, %144, %cst_118 [1] : vector<8x14xf32> to vector<8xf32>
    %146 = vector.shape_cast %145 : vector<8xf32> to vector<8x1xf32>
    %147 = vector.broadcast %36 : f32 to vector<8x1xf32>
    %148 = arith.addf %146, %147 : vector<8x1xf32>
    %cst_119 = arith.constant 0.000000e+00 : f32
    %149 = vector.broadcast %cst_119 : f32 to vector<8x1xf32>
    %150 = arith.maximumf %148, %149 : vector<8x1xf32>
    %151 = vector.broadcast %47 : f32 to vector<8x1xf32>
    %152 = arith.mulf %151, %150 : vector<8x1xf32>
    %153 = arith.addf %133, %152 : vector<8x1xf32>
    %154 = vector.broadcast %58 : f32 to vector<8x1xf32>
    %155 = arith.mulf %154, %150 : vector<8x1xf32>
    %156 = arith.addf %136, %155 : vector<8x1xf32>
    %157 = vector.broadcast %4 : f32 to vector<8x14xf32>
    %158 = arith.mulf %157, %72 : vector<8x14xf32>
    %159 = vector.broadcast %15 : f32 to vector<8x14xf32>
    %160 = arith.mulf %159, %73 : vector<8x14xf32>
    %161 = arith.addf %158, %160 : vector<8x14xf32>
    %162 = vector.broadcast %26 : f32 to vector<8x14xf32>
    %163 = arith.mulf %162, %74 : vector<8x14xf32>
    %164 = arith.addf %161, %163 : vector<8x14xf32>
    %cst_120 = arith.constant dense<0xFF800000> : vector<8xf32>
    %165 = vector.multi_reduction <maximumf>, %164, %cst_120 [1] : vector<8x14xf32> to vector<8xf32>
    %166 = vector.shape_cast %165 : vector<8xf32> to vector<8x1xf32>
    %167 = vector.broadcast %37 : f32 to vector<8x1xf32>
    %168 = arith.addf %166, %167 : vector<8x1xf32>
    %cst_121 = arith.constant 0.000000e+00 : f32
    %169 = vector.broadcast %cst_121 : f32 to vector<8x1xf32>
    %170 = arith.maximumf %168, %169 : vector<8x1xf32>
    %171 = vector.broadcast %48 : f32 to vector<8x1xf32>
    %172 = arith.mulf %171, %170 : vector<8x1xf32>
    %173 = arith.addf %153, %172 : vector<8x1xf32>
    %174 = vector.broadcast %59 : f32 to vector<8x1xf32>
    %175 = arith.mulf %174, %170 : vector<8x1xf32>
    %176 = arith.addf %156, %175 : vector<8x1xf32>
    %177 = vector.broadcast %5 : f32 to vector<8x14xf32>
    %178 = arith.mulf %177, %72 : vector<8x14xf32>
    %179 = vector.broadcast %16 : f32 to vector<8x14xf32>
    %180 = arith.mulf %179, %73 : vector<8x14xf32>
    %181 = arith.addf %178, %180 : vector<8x14xf32>
    %182 = vector.broadcast %27 : f32 to vector<8x14xf32>
    %183 = arith.mulf %182, %74 : vector<8x14xf32>
    %184 = arith.addf %181, %183 : vector<8x14xf32>
    %cst_122 = arith.constant dense<0xFF800000> : vector<8xf32>
    %185 = vector.multi_reduction <maximumf>, %184, %cst_122 [1] : vector<8x14xf32> to vector<8xf32>
    %186 = vector.shape_cast %185 : vector<8xf32> to vector<8x1xf32>
    %187 = vector.broadcast %38 : f32 to vector<8x1xf32>
    %188 = arith.addf %186, %187 : vector<8x1xf32>
    %cst_123 = arith.constant 0.000000e+00 : f32
    %189 = vector.broadcast %cst_123 : f32 to vector<8x1xf32>
    %190 = arith.maximumf %188, %189 : vector<8x1xf32>
    %191 = vector.broadcast %49 : f32 to vector<8x1xf32>
    %192 = arith.mulf %191, %190 : vector<8x1xf32>
    %193 = arith.addf %173, %192 : vector<8x1xf32>
    %194 = vector.broadcast %60 : f32 to vector<8x1xf32>
    %195 = arith.mulf %194, %190 : vector<8x1xf32>
    %196 = arith.addf %176, %195 : vector<8x1xf32>
    %197 = vector.broadcast %6 : f32 to vector<8x14xf32>
    %198 = arith.mulf %197, %72 : vector<8x14xf32>
    %199 = vector.broadcast %17 : f32 to vector<8x14xf32>
    %200 = arith.mulf %199, %73 : vector<8x14xf32>
    %201 = arith.addf %198, %200 : vector<8x14xf32>
    %202 = vector.broadcast %28 : f32 to vector<8x14xf32>
    %203 = arith.mulf %202, %74 : vector<8x14xf32>
    %204 = arith.addf %201, %203 : vector<8x14xf32>
    %cst_124 = arith.constant dense<0xFF800000> : vector<8xf32>
    %205 = vector.multi_reduction <maximumf>, %204, %cst_124 [1] : vector<8x14xf32> to vector<8xf32>
    %206 = vector.shape_cast %205 : vector<8xf32> to vector<8x1xf32>
    %207 = vector.broadcast %39 : f32 to vector<8x1xf32>
    %208 = arith.addf %206, %207 : vector<8x1xf32>
    %cst_125 = arith.constant 0.000000e+00 : f32
    %209 = vector.broadcast %cst_125 : f32 to vector<8x1xf32>
    %210 = arith.maximumf %208, %209 : vector<8x1xf32>
    %211 = vector.broadcast %50 : f32 to vector<8x1xf32>
    %212 = arith.mulf %211, %210 : vector<8x1xf32>
    %213 = arith.addf %193, %212 : vector<8x1xf32>
    %214 = vector.broadcast %61 : f32 to vector<8x1xf32>
    %215 = arith.mulf %214, %210 : vector<8x1xf32>
    %216 = arith.addf %196, %215 : vector<8x1xf32>
    %217 = vector.broadcast %7 : f32 to vector<8x14xf32>
    %218 = arith.mulf %217, %72 : vector<8x14xf32>
    %219 = vector.broadcast %18 : f32 to vector<8x14xf32>
    %220 = arith.mulf %219, %73 : vector<8x14xf32>
    %221 = arith.addf %218, %220 : vector<8x14xf32>
    %222 = vector.broadcast %29 : f32 to vector<8x14xf32>
    %223 = arith.mulf %222, %74 : vector<8x14xf32>
    %224 = arith.addf %221, %223 : vector<8x14xf32>
    %cst_126 = arith.constant dense<0xFF800000> : vector<8xf32>
    %225 = vector.multi_reduction <maximumf>, %224, %cst_126 [1] : vector<8x14xf32> to vector<8xf32>
    %226 = vector.shape_cast %225 : vector<8xf32> to vector<8x1xf32>
    %227 = vector.broadcast %40 : f32 to vector<8x1xf32>
    %228 = arith.addf %226, %227 : vector<8x1xf32>
    %cst_127 = arith.constant 0.000000e+00 : f32
    %229 = vector.broadcast %cst_127 : f32 to vector<8x1xf32>
    %230 = arith.maximumf %228, %229 : vector<8x1xf32>
    %231 = vector.broadcast %51 : f32 to vector<8x1xf32>
    %232 = arith.mulf %231, %230 : vector<8x1xf32>
    %233 = arith.addf %213, %232 : vector<8x1xf32>
    %234 = vector.broadcast %62 : f32 to vector<8x1xf32>
    %235 = arith.mulf %234, %230 : vector<8x1xf32>
    %236 = arith.addf %216, %235 : vector<8x1xf32>
    %237 = vector.broadcast %8 : f32 to vector<8x14xf32>
    %238 = arith.mulf %237, %72 : vector<8x14xf32>
    %239 = vector.broadcast %19 : f32 to vector<8x14xf32>
    %240 = arith.mulf %239, %73 : vector<8x14xf32>
    %241 = arith.addf %238, %240 : vector<8x14xf32>
    %242 = vector.broadcast %30 : f32 to vector<8x14xf32>
    %243 = arith.mulf %242, %74 : vector<8x14xf32>
    %244 = arith.addf %241, %243 : vector<8x14xf32>
    %cst_128 = arith.constant dense<0xFF800000> : vector<8xf32>
    %245 = vector.multi_reduction <maximumf>, %244, %cst_128 [1] : vector<8x14xf32> to vector<8xf32>
    %246 = vector.shape_cast %245 : vector<8xf32> to vector<8x1xf32>
    %247 = vector.broadcast %41 : f32 to vector<8x1xf32>
    %248 = arith.addf %246, %247 : vector<8x1xf32>
    %cst_129 = arith.constant 0.000000e+00 : f32
    %249 = vector.broadcast %cst_129 : f32 to vector<8x1xf32>
    %250 = arith.maximumf %248, %249 : vector<8x1xf32>
    %251 = vector.broadcast %52 : f32 to vector<8x1xf32>
    %252 = arith.mulf %251, %250 : vector<8x1xf32>
    %253 = arith.addf %233, %252 : vector<8x1xf32>
    %254 = vector.broadcast %63 : f32 to vector<8x1xf32>
    %255 = arith.mulf %254, %250 : vector<8x1xf32>
    %256 = arith.addf %236, %255 : vector<8x1xf32>
    %257 = vector.broadcast %9 : f32 to vector<8x14xf32>
    %258 = arith.mulf %257, %72 : vector<8x14xf32>
    %259 = vector.broadcast %20 : f32 to vector<8x14xf32>
    %260 = arith.mulf %259, %73 : vector<8x14xf32>
    %261 = arith.addf %258, %260 : vector<8x14xf32>
    %262 = vector.broadcast %31 : f32 to vector<8x14xf32>
    %263 = arith.mulf %262, %74 : vector<8x14xf32>
    %264 = arith.addf %261, %263 : vector<8x14xf32>
    %cst_130 = arith.constant dense<0xFF800000> : vector<8xf32>
    %265 = vector.multi_reduction <maximumf>, %264, %cst_130 [1] : vector<8x14xf32> to vector<8xf32>
    %266 = vector.shape_cast %265 : vector<8xf32> to vector<8x1xf32>
    %267 = vector.broadcast %42 : f32 to vector<8x1xf32>
    %268 = arith.addf %266, %267 : vector<8x1xf32>
    %cst_131 = arith.constant 0.000000e+00 : f32
    %269 = vector.broadcast %cst_131 : f32 to vector<8x1xf32>
    %270 = arith.maximumf %268, %269 : vector<8x1xf32>
    %271 = vector.broadcast %53 : f32 to vector<8x1xf32>
    %272 = arith.mulf %271, %270 : vector<8x1xf32>
    %273 = arith.addf %253, %272 : vector<8x1xf32>
    %274 = vector.broadcast %64 : f32 to vector<8x1xf32>
    %275 = arith.mulf %274, %270 : vector<8x1xf32>
    %276 = arith.addf %256, %275 : vector<8x1xf32>
    %277 = vector.broadcast %10 : f32 to vector<8x14xf32>
    %278 = arith.mulf %277, %72 : vector<8x14xf32>
    %279 = vector.broadcast %21 : f32 to vector<8x14xf32>
    %280 = arith.mulf %279, %73 : vector<8x14xf32>
    %281 = arith.addf %278, %280 : vector<8x14xf32>
    %282 = vector.broadcast %32 : f32 to vector<8x14xf32>
    %283 = arith.mulf %282, %74 : vector<8x14xf32>
    %284 = arith.addf %281, %283 : vector<8x14xf32>
    %cst_132 = arith.constant dense<0xFF800000> : vector<8xf32>
    %285 = vector.multi_reduction <maximumf>, %284, %cst_132 [1] : vector<8x14xf32> to vector<8xf32>
    %286 = vector.shape_cast %285 : vector<8xf32> to vector<8x1xf32>
    %287 = vector.broadcast %43 : f32 to vector<8x1xf32>
    %288 = arith.addf %286, %287 : vector<8x1xf32>
    %cst_133 = arith.constant 0.000000e+00 : f32
    %289 = vector.broadcast %cst_133 : f32 to vector<8x1xf32>
    %290 = arith.maximumf %288, %289 : vector<8x1xf32>
    %291 = vector.broadcast %54 : f32 to vector<8x1xf32>
    %292 = arith.mulf %291, %290 : vector<8x1xf32>
    %293 = arith.addf %273, %292 : vector<8x1xf32>
    %294 = vector.broadcast %65 : f32 to vector<8x1xf32>
    %295 = arith.mulf %294, %290 : vector<8x1xf32>
    %296 = arith.addf %276, %295 : vector<8x1xf32>
    %297 = arith.index_cast %69 : i32 to index
    %c0_134 = arith.constant 0 : index
    %298 = vector.load %arg6[%297, %c0_134] : memref<24x2xf32, #tpu.memory_space<vmem>>, vector<8x1xf32>
    tpu.vector_store %arg6[%297, %c0_134], %293 {strides = array<i32>} : memref<24x2xf32, #tpu.memory_space<vmem>>, vector<8x1xf32>,
    %299 = arith.index_cast %69 : i32 to index
    %c1_135 = arith.constant 1 : index
    %300 = vector.load %arg6[%299, %c1_135] : memref<24x2xf32, #tpu.memory_space<vmem>>, vector<8x1xf32>
    tpu.vector_store %arg6[%299, %c1_135], %296 {strides = array<i32>} : memref<24x2xf32, #tpu.memory_space<vmem>>, vector<8x1xf32>,
    %c1_i32 = arith.constant 1 : i32
    %c8_i32_136 = arith.constant 8 : i32
    %301 = arith.muli %c1_i32, %c8_i32_136 : i32
    %302 = tpu.assume_multiple %301, 8 : i32
    %303 = arith.index_cast %302 : i32 to index
    %c0_137 = arith.constant 0 : index
    %304 = vector.load %arg1[%303, %c0_137] : memref<24x16xf32, #tpu.memory_space<vmem>>, vector<8x16xf32>
    %305 = vector.extract_strided_slice %304 {offsets = [0, 0], sizes = [8, 14], strides = [1, 1]} : vector<8x16xf32> to vector<8x14xf32>
    %306 = vector.extract_strided_slice %304 {offsets = [0, 1], sizes = [8, 14], strides = [1, 1]} : vector<8x16xf32> to vector<8x14xf32>
    %307 = vector.extract_strided_slice %304 {offsets = [0, 2], sizes = [8, 14], strides = [1, 1]} : vector<8x16xf32> to vector<8x14xf32>
    %308 = vector.broadcast %66 : f32 to vector<8x1xf32>
    %309 = vector.broadcast %67 : f32 to vector<8x1xf32>
    %310 = vector.broadcast %0 : f32 to vector<8x14xf32>
    %311 = arith.mulf %310, %305 : vector<8x14xf32>
    %312 = vector.broadcast %11 : f32 to vector<8x14xf32>
    %313 = arith.mulf %312, %306 : vector<8x14xf32>
    %314 = arith.addf %311, %313 : vector<8x14xf32>
    %315 = vector.broadcast %22 : f32 to vector<8x14xf32>
    %316 = arith.mulf %315, %307 : vector<8x14xf32>
    %317 = arith.addf %314, %316 : vector<8x14xf32>
    %cst_138 = arith.constant dense<0xFF800000> : vector<8xf32>
    %318 = vector.multi_reduction <maximumf>, %317, %cst_138 [1] : vector<8x14xf32> to vector<8xf32>
    %319 = vector.shape_cast %318 : vector<8xf32> to vector<8x1xf32>
    %320 = vector.broadcast %33 : f32 to vector<8x1xf32>
    %321 = arith.addf %319, %320 : vector<8x1xf32>
    %cst_139 = arith.constant 0.000000e+00 : f32
    %322 = vector.broadcast %cst_139 : f32 to vector<8x1xf32>
    %323 = arith.maximumf %321, %322 : vector<8x1xf32>
    %324 = vector.broadcast %44 : f32 to vector<8x1xf32>
    %325 = arith.mulf %324, %323 : vector<8x1xf32>
    %326 = arith.addf %308, %325 : vector<8x1xf32>
    %327 = vector.broadcast %55 : f32 to vector<8x1xf32>
    %328 = arith.mulf %327, %323 : vector<8x1xf32>
    %329 = arith.addf %309, %328 : vector<8x1xf32>
    %330 = vector.broadcast %1 : f32 to vector<8x14xf32>
    %331 = arith.mulf %330, %305 : vector<8x14xf32>
    %332 = vector.broadcast %12 : f32 to vector<8x14xf32>
    %333 = arith.mulf %332, %306 : vector<8x14xf32>
    %334 = arith.addf %331, %333 : vector<8x14xf32>
    %335 = vector.broadcast %23 : f32 to vector<8x14xf32>
    %336 = arith.mulf %335, %307 : vector<8x14xf32>
    %337 = arith.addf %334, %336 : vector<8x14xf32>
    %cst_140 = arith.constant dense<0xFF800000> : vector<8xf32>
    %338 = vector.multi_reduction <maximumf>, %337, %cst_140 [1] : vector<8x14xf32> to vector<8xf32>
    %339 = vector.shape_cast %338 : vector<8xf32> to vector<8x1xf32>
    %340 = vector.broadcast %34 : f32 to vector<8x1xf32>
    %341 = arith.addf %339, %340 : vector<8x1xf32>
    %cst_141 = arith.constant 0.000000e+00 : f32
    %342 = vector.broadcast %cst_141 : f32 to vector<8x1xf32>
    %343 = arith.maximumf %341, %342 : vector<8x1xf32>
    %344 = vector.broadcast %45 : f32 to vector<8x1xf32>
    %345 = arith.mulf %344, %343 : vector<8x1xf32>
    %346 = arith.addf %326, %345 : vector<8x1xf32>
    %347 = vector.broadcast %56 : f32 to vector<8x1xf32>
    %348 = arith.mulf %347, %343 : vector<8x1xf32>
    %349 = arith.addf %329, %348 : vector<8x1xf32>
    %350 = vector.broadcast %2 : f32 to vector<8x14xf32>
    %351 = arith.mulf %350, %305 : vector<8x14xf32>
    %352 = vector.broadcast %13 : f32 to vector<8x14xf32>
    %353 = arith.mulf %352, %306 : vector<8x14xf32>
    %354 = arith.addf %351, %353 : vector<8x14xf32>
    %355 = vector.broadcast %24 : f32 to vector<8x14xf32>
    %356 = arith.mulf %355, %307 : vector<8x14xf32>
    %357 = arith.addf %354, %356 : vector<8x14xf32>
    %cst_142 = arith.constant dense<0xFF800000> : vector<8xf32>
    %358 = vector.multi_reduction <maximumf>, %357, %cst_142 [1] : vector<8x14xf32> to vector<8xf32>
    %359 = vector.shape_cast %358 : vector<8xf32> to vector<8x1xf32>
    %360 = vector.broadcast %35 : f32 to vector<8x1xf32>
    %361 = arith.addf %359, %360 : vector<8x1xf32>
    %cst_143 = arith.constant 0.000000e+00 : f32
    %362 = vector.broadcast %cst_143 : f32 to vector<8x1xf32>
    %363 = arith.maximumf %361, %362 : vector<8x1xf32>
    %364 = vector.broadcast %46 : f32 to vector<8x1xf32>
    %365 = arith.mulf %364, %363 : vector<8x1xf32>
    %366 = arith.addf %346, %365 : vector<8x1xf32>
    %367 = vector.broadcast %57 : f32 to vector<8x1xf32>
    %368 = arith.mulf %367, %363 : vector<8x1xf32>
    %369 = arith.addf %349, %368 : vector<8x1xf32>
    %370 = vector.broadcast %3 : f32 to vector<8x14xf32>
    %371 = arith.mulf %370, %305 : vector<8x14xf32>
    %372 = vector.broadcast %14 : f32 to vector<8x14xf32>
    %373 = arith.mulf %372, %306 : vector<8x14xf32>
    %374 = arith.addf %371, %373 : vector<8x14xf32>
    %375 = vector.broadcast %25 : f32 to vector<8x14xf32>
    %376 = arith.mulf %375, %307 : vector<8x14xf32>
    %377 = arith.addf %374, %376 : vector<8x14xf32>
    %cst_144 = arith.constant dense<0xFF800000> : vector<8xf32>
    %378 = vector.multi_reduction <maximumf>, %377, %cst_144 [1] : vector<8x14xf32> to vector<8xf32>
    %379 = vector.shape_cast %378 : vector<8xf32> to vector<8x1xf32>
    %380 = vector.broadcast %36 : f32 to vector<8x1xf32>
    %381 = arith.addf %379, %380 : vector<8x1xf32>
    %cst_145 = arith.constant 0.000000e+00 : f32
    %382 = vector.broadcast %cst_145 : f32 to vector<8x1xf32>
    %383 = arith.maximumf %381, %382 : vector<8x1xf32>
    %384 = vector.broadcast %47 : f32 to vector<8x1xf32>
    %385 = arith.mulf %384, %383 : vector<8x1xf32>
    %386 = arith.addf %366, %385 : vector<8x1xf32>
    %387 = vector.broadcast %58 : f32 to vector<8x1xf32>
    %388 = arith.mulf %387, %383 : vector<8x1xf32>
    %389 = arith.addf %369, %388 : vector<8x1xf32>
    %390 = vector.broadcast %4 : f32 to vector<8x14xf32>
    %391 = arith.mulf %390, %305 : vector<8x14xf32>
    %392 = vector.broadcast %15 : f32 to vector<8x14xf32>
    %393 = arith.mulf %392, %306 : vector<8x14xf32>
    %394 = arith.addf %391, %393 : vector<8x14xf32>
    %395 = vector.broadcast %26 : f32 to vector<8x14xf32>
    %396 = arith.mulf %395, %307 : vector<8x14xf32>
    %397 = arith.addf %394, %396 : vector<8x14xf32>
    %cst_146 = arith.constant dense<0xFF800000> : vector<8xf32>
    %398 = vector.multi_reduction <maximumf>, %397, %cst_146 [1] : vector<8x14xf32> to vector<8xf32>
    %399 = vector.shape_cast %398 : vector<8xf32> to vector<8x1xf32>
    %400 = vector.broadcast %37 : f32 to vector<8x1xf32>
    %401 = arith.addf %399, %400 : vector<8x1xf32>
    %cst_147 = arith.constant 0.000000e+00 : f32
    %402 = vector.broadcast %cst_147 : f32 to vector<8x1xf32>
    %403 = arith.maximumf %401, %402 : vector<8x1xf32>
    %404 = vector.broadcast %48 : f32 to vector<8x1xf32>
    %405 = arith.mulf %404, %403 : vector<8x1xf32>
    %406 = arith.addf %386, %405 : vector<8x1xf32>
    %407 = vector.broadcast %59 : f32 to vector<8x1xf32>
    %408 = arith.mulf %407, %403 : vector<8x1xf32>
    %409 = arith.addf %389, %408 : vector<8x1xf32>
    %410 = vector.broadcast %5 : f32 to vector<8x14xf32>
    %411 = arith.mulf %410, %305 : vector<8x14xf32>
    %412 = vector.broadcast %16 : f32 to vector<8x14xf32>
    %413 = arith.mulf %412, %306 : vector<8x14xf32>
    %414 = arith.addf %411, %413 : vector<8x14xf32>
    %415 = vector.broadcast %27 : f32 to vector<8x14xf32>
    %416 = arith.mulf %415, %307 : vector<8x14xf32>
    %417 = arith.addf %414, %416 : vector<8x14xf32>
    %cst_148 = arith.constant dense<0xFF800000> : vector<8xf32>
    %418 = vector.multi_reduction <maximumf>, %417, %cst_148 [1] : vector<8x14xf32> to vector<8xf32>
    %419 = vector.shape_cast %418 : vector<8xf32> to vector<8x1xf32>
    %420 = vector.broadcast %38 : f32 to vector<8x1xf32>
    %421 = arith.addf %419, %420 : vector<8x1xf32>
    %cst_149 = arith.constant 0.000000e+00 : f32
    %422 = vector.broadcast %cst_149 : f32 to vector<8x1xf32>
    %423 = arith.maximumf %421, %422 : vector<8x1xf32>
    %424 = vector.broadcast %49 : f32 to vector<8x1xf32>
    %425 = arith.mulf %424, %423 : vector<8x1xf32>
    %426 = arith.addf %406, %425 : vector<8x1xf32>
    %427 = vector.broadcast %60 : f32 to vector<8x1xf32>
    %428 = arith.mulf %427, %423 : vector<8x1xf32>
    %429 = arith.addf %409, %428 : vector<8x1xf32>
    %430 = vector.broadcast %6 : f32 to vector<8x14xf32>
    %431 = arith.mulf %430, %305 : vector<8x14xf32>
    %432 = vector.broadcast %17 : f32 to vector<8x14xf32>
    %433 = arith.mulf %432, %306 : vector<8x14xf32>
    %434 = arith.addf %431, %433 : vector<8x14xf32>
    %435 = vector.broadcast %28 : f32 to vector<8x14xf32>
    %436 = arith.mulf %435, %307 : vector<8x14xf32>
    %437 = arith.addf %434, %436 : vector<8x14xf32>
    %cst_150 = arith.constant dense<0xFF800000> : vector<8xf32>
    %438 = vector.multi_reduction <maximumf>, %437, %cst_150 [1] : vector<8x14xf32> to vector<8xf32>
    %439 = vector.shape_cast %438 : vector<8xf32> to vector<8x1xf32>
    %440 = vector.broadcast %39 : f32 to vector<8x1xf32>
    %441 = arith.addf %439, %440 : vector<8x1xf32>
    %cst_151 = arith.constant 0.000000e+00 : f32
    %442 = vector.broadcast %cst_151 : f32 to vector<8x1xf32>
    %443 = arith.maximumf %441, %442 : vector<8x1xf32>
    %444 = vector.broadcast %50 : f32 to vector<8x1xf32>
    %445 = arith.mulf %444, %443 : vector<8x1xf32>
    %446 = arith.addf %426, %445 : vector<8x1xf32>
    %447 = vector.broadcast %61 : f32 to vector<8x1xf32>
    %448 = arith.mulf %447, %443 : vector<8x1xf32>
    %449 = arith.addf %429, %448 : vector<8x1xf32>
    %450 = vector.broadcast %7 : f32 to vector<8x14xf32>
    %451 = arith.mulf %450, %305 : vector<8x14xf32>
    %452 = vector.broadcast %18 : f32 to vector<8x14xf32>
    %453 = arith.mulf %452, %306 : vector<8x14xf32>
    %454 = arith.addf %451, %453 : vector<8x14xf32>
    %455 = vector.broadcast %29 : f32 to vector<8x14xf32>
    %456 = arith.mulf %455, %307 : vector<8x14xf32>
    %457 = arith.addf %454, %456 : vector<8x14xf32>
    %cst_152 = arith.constant dense<0xFF800000> : vector<8xf32>
    %458 = vector.multi_reduction <maximumf>, %457, %cst_152 [1] : vector<8x14xf32> to vector<8xf32>
    %459 = vector.shape_cast %458 : vector<8xf32> to vector<8x1xf32>
    %460 = vector.broadcast %40 : f32 to vector<8x1xf32>
    %461 = arith.addf %459, %460 : vector<8x1xf32>
    %cst_153 = arith.constant 0.000000e+00 : f32
    %462 = vector.broadcast %cst_153 : f32 to vector<8x1xf32>
    %463 = arith.maximumf %461, %462 : vector<8x1xf32>
    %464 = vector.broadcast %51 : f32 to vector<8x1xf32>
    %465 = arith.mulf %464, %463 : vector<8x1xf32>
    %466 = arith.addf %446, %465 : vector<8x1xf32>
    %467 = vector.broadcast %62 : f32 to vector<8x1xf32>
    %468 = arith.mulf %467, %463 : vector<8x1xf32>
    %469 = arith.addf %449, %468 : vector<8x1xf32>
    %470 = vector.broadcast %8 : f32 to vector<8x14xf32>
    %471 = arith.mulf %470, %305 : vector<8x14xf32>
    %472 = vector.broadcast %19 : f32 to vector<8x14xf32>
    %473 = arith.mulf %472, %306 : vector<8x14xf32>
    %474 = arith.addf %471, %473 : vector<8x14xf32>
    %475 = vector.broadcast %30 : f32 to vector<8x14xf32>
    %476 = arith.mulf %475, %307 : vector<8x14xf32>
    %477 = arith.addf %474, %476 : vector<8x14xf32>
    %cst_154 = arith.constant dense<0xFF800000> : vector<8xf32>
    %478 = vector.multi_reduction <maximumf>, %477, %cst_154 [1] : vector<8x14xf32> to vector<8xf32>
    %479 = vector.shape_cast %478 : vector<8xf32> to vector<8x1xf32>
    %480 = vector.broadcast %41 : f32 to vector<8x1xf32>
    %481 = arith.addf %479, %480 : vector<8x1xf32>
    %cst_155 = arith.constant 0.000000e+00 : f32
    %482 = vector.broadcast %cst_155 : f32 to vector<8x1xf32>
    %483 = arith.maximumf %481, %482 : vector<8x1xf32>
    %484 = vector.broadcast %52 : f32 to vector<8x1xf32>
    %485 = arith.mulf %484, %483 : vector<8x1xf32>
    %486 = arith.addf %466, %485 : vector<8x1xf32>
    %487 = vector.broadcast %63 : f32 to vector<8x1xf32>
    %488 = arith.mulf %487, %483 : vector<8x1xf32>
    %489 = arith.addf %469, %488 : vector<8x1xf32>
    %490 = vector.broadcast %9 : f32 to vector<8x14xf32>
    %491 = arith.mulf %490, %305 : vector<8x14xf32>
    %492 = vector.broadcast %20 : f32 to vector<8x14xf32>
    %493 = arith.mulf %492, %306 : vector<8x14xf32>
    %494 = arith.addf %491, %493 : vector<8x14xf32>
    %495 = vector.broadcast %31 : f32 to vector<8x14xf32>
    %496 = arith.mulf %495, %307 : vector<8x14xf32>
    %497 = arith.addf %494, %496 : vector<8x14xf32>
    %cst_156 = arith.constant dense<0xFF800000> : vector<8xf32>
    %498 = vector.multi_reduction <maximumf>, %497, %cst_156 [1] : vector<8x14xf32> to vector<8xf32>
    %499 = vector.shape_cast %498 : vector<8xf32> to vector<8x1xf32>
    %500 = vector.broadcast %42 : f32 to vector<8x1xf32>
    %501 = arith.addf %499, %500 : vector<8x1xf32>
    %cst_157 = arith.constant 0.000000e+00 : f32
    %502 = vector.broadcast %cst_157 : f32 to vector<8x1xf32>
    %503 = arith.maximumf %501, %502 : vector<8x1xf32>
    %504 = vector.broadcast %53 : f32 to vector<8x1xf32>
    %505 = arith.mulf %504, %503 : vector<8x1xf32>
    %506 = arith.addf %486, %505 : vector<8x1xf32>
    %507 = vector.broadcast %64 : f32 to vector<8x1xf32>
    %508 = arith.mulf %507, %503 : vector<8x1xf32>
    %509 = arith.addf %489, %508 : vector<8x1xf32>
    %510 = vector.broadcast %10 : f32 to vector<8x14xf32>
    %511 = arith.mulf %510, %305 : vector<8x14xf32>
    %512 = vector.broadcast %21 : f32 to vector<8x14xf32>
    %513 = arith.mulf %512, %306 : vector<8x14xf32>
    %514 = arith.addf %511, %513 : vector<8x14xf32>
    %515 = vector.broadcast %32 : f32 to vector<8x14xf32>
    %516 = arith.mulf %515, %307 : vector<8x14xf32>
    %517 = arith.addf %514, %516 : vector<8x14xf32>
    %cst_158 = arith.constant dense<0xFF800000> : vector<8xf32>
    %518 = vector.multi_reduction <maximumf>, %517, %cst_158 [1] : vector<8x14xf32> to vector<8xf32>
    %519 = vector.shape_cast %518 : vector<8xf32> to vector<8x1xf32>
    %520 = vector.broadcast %43 : f32 to vector<8x1xf32>
    %521 = arith.addf %519, %520 : vector<8x1xf32>
    %cst_159 = arith.constant 0.000000e+00 : f32
    %522 = vector.broadcast %cst_159 : f32 to vector<8x1xf32>
    %523 = arith.maximumf %521, %522 : vector<8x1xf32>
    %524 = vector.broadcast %54 : f32 to vector<8x1xf32>
    %525 = arith.mulf %524, %523 : vector<8x1xf32>
    %526 = arith.addf %506, %525 : vector<8x1xf32>
    %527 = vector.broadcast %65 : f32 to vector<8x1xf32>
    %528 = arith.mulf %527, %523 : vector<8x1xf32>
    %529 = arith.addf %509, %528 : vector<8x1xf32>
    %530 = arith.index_cast %302 : i32 to index
    %c0_160 = arith.constant 0 : index
    %531 = vector.load %arg6[%530, %c0_160] : memref<24x2xf32, #tpu.memory_space<vmem>>, vector<8x1xf32>
    tpu.vector_store %arg6[%530, %c0_160], %526 {strides = array<i32>} : memref<24x2xf32, #tpu.memory_space<vmem>>, vector<8x1xf32>,
    %532 = arith.index_cast %302 : i32 to index
    %c1_161 = arith.constant 1 : index
    %533 = vector.load %arg6[%532, %c1_161] : memref<24x2xf32, #tpu.memory_space<vmem>>, vector<8x1xf32>
    tpu.vector_store %arg6[%532, %c1_161], %529 {strides = array<i32>} : memref<24x2xf32, #tpu.memory_space<vmem>>, vector<8x1xf32>,
    %c2_i32 = arith.constant 2 : i32
    %c8_i32_162 = arith.constant 8 : i32
    %534 = arith.muli %c2_i32, %c8_i32_162 : i32
    %535 = tpu.assume_multiple %534, 8 : i32
    %536 = arith.index_cast %535 : i32 to index
    %c0_163 = arith.constant 0 : index
    %537 = vector.load %arg1[%536, %c0_163] : memref<24x16xf32, #tpu.memory_space<vmem>>, vector<8x16xf32>
    %538 = vector.extract_strided_slice %537 {offsets = [0, 0], sizes = [8, 14], strides = [1, 1]} : vector<8x16xf32> to vector<8x14xf32>
    %539 = vector.extract_strided_slice %537 {offsets = [0, 1], sizes = [8, 14], strides = [1, 1]} : vector<8x16xf32> to vector<8x14xf32>
    %540 = vector.extract_strided_slice %537 {offsets = [0, 2], sizes = [8, 14], strides = [1, 1]} : vector<8x16xf32> to vector<8x14xf32>
    %541 = vector.broadcast %66 : f32 to vector<8x1xf32>
    %542 = vector.broadcast %67 : f32 to vector<8x1xf32>
    %543 = vector.broadcast %0 : f32 to vector<8x14xf32>
    %544 = arith.mulf %543, %538 : vector<8x14xf32>
    %545 = vector.broadcast %11 : f32 to vector<8x14xf32>
    %546 = arith.mulf %545, %539 : vector<8x14xf32>
    %547 = arith.addf %544, %546 : vector<8x14xf32>
    %548 = vector.broadcast %22 : f32 to vector<8x14xf32>
    %549 = arith.mulf %548, %540 : vector<8x14xf32>
    %550 = arith.addf %547, %549 : vector<8x14xf32>
    %cst_164 = arith.constant dense<0xFF800000> : vector<8xf32>
    %551 = vector.multi_reduction <maximumf>, %550, %cst_164 [1] : vector<8x14xf32> to vector<8xf32>
    %552 = vector.shape_cast %551 : vector<8xf32> to vector<8x1xf32>
    %553 = vector.broadcast %33 : f32 to vector<8x1xf32>
    %554 = arith.addf %552, %553 : vector<8x1xf32>
    %cst_165 = arith.constant 0.000000e+00 : f32
    %555 = vector.broadcast %cst_165 : f32 to vector<8x1xf32>
    %556 = arith.maximumf %554, %555 : vector<8x1xf32>
    %557 = vector.broadcast %44 : f32 to vector<8x1xf32>
    %558 = arith.mulf %557, %556 : vector<8x1xf32>
    %559 = arith.addf %541, %558 : vector<8x1xf32>
    %560 = vector.broadcast %55 : f32 to vector<8x1xf32>
    %561 = arith.mulf %560, %556 : vector<8x1xf32>
    %562 = arith.addf %542, %561 : vector<8x1xf32>
    %563 = vector.broadcast %1 : f32 to vector<8x14xf32>
    %564 = arith.mulf %563, %538 : vector<8x14xf32>
    %565 = vector.broadcast %12 : f32 to vector<8x14xf32>
    %566 = arith.mulf %565, %539 : vector<8x14xf32>
    %567 = arith.addf %564, %566 : vector<8x14xf32>
    %568 = vector.broadcast %23 : f32 to vector<8x14xf32>
    %569 = arith.mulf %568, %540 : vector<8x14xf32>
    %570 = arith.addf %567, %569 : vector<8x14xf32>
    %cst_166 = arith.constant dense<0xFF800000> : vector<8xf32>
    %571 = vector.multi_reduction <maximumf>, %570, %cst_166 [1] : vector<8x14xf32> to vector<8xf32>
    %572 = vector.shape_cast %571 : vector<8xf32> to vector<8x1xf32>
    %573 = vector.broadcast %34 : f32 to vector<8x1xf32>
    %574 = arith.addf %572, %573 : vector<8x1xf32>
    %cst_167 = arith.constant 0.000000e+00 : f32
    %575 = vector.broadcast %cst_167 : f32 to vector<8x1xf32>
    %576 = arith.maximumf %574, %575 : vector<8x1xf32>
    %577 = vector.broadcast %45 : f32 to vector<8x1xf32>
    %578 = arith.mulf %577, %576 : vector<8x1xf32>
    %579 = arith.addf %559, %578 : vector<8x1xf32>
    %580 = vector.broadcast %56 : f32 to vector<8x1xf32>
    %581 = arith.mulf %580, %576 : vector<8x1xf32>
    %582 = arith.addf %562, %581 : vector<8x1xf32>
    %583 = vector.broadcast %2 : f32 to vector<8x14xf32>
    %584 = arith.mulf %583, %538 : vector<8x14xf32>
    %585 = vector.broadcast %13 : f32 to vector<8x14xf32>
    %586 = arith.mulf %585, %539 : vector<8x14xf32>
    %587 = arith.addf %584, %586 : vector<8x14xf32>
    %588 = vector.broadcast %24 : f32 to vector<8x14xf32>
    %589 = arith.mulf %588, %540 : vector<8x14xf32>
    %590 = arith.addf %587, %589 : vector<8x14xf32>
    %cst_168 = arith.constant dense<0xFF800000> : vector<8xf32>
    %591 = vector.multi_reduction <maximumf>, %590, %cst_168 [1] : vector<8x14xf32> to vector<8xf32>
    %592 = vector.shape_cast %591 : vector<8xf32> to vector<8x1xf32>
    %593 = vector.broadcast %35 : f32 to vector<8x1xf32>
    %594 = arith.addf %592, %593 : vector<8x1xf32>
    %cst_169 = arith.constant 0.000000e+00 : f32
    %595 = vector.broadcast %cst_169 : f32 to vector<8x1xf32>
    %596 = arith.maximumf %594, %595 : vector<8x1xf32>
    %597 = vector.broadcast %46 : f32 to vector<8x1xf32>
    %598 = arith.mulf %597, %596 : vector<8x1xf32>
    %599 = arith.addf %579, %598 : vector<8x1xf32>
    %600 = vector.broadcast %57 : f32 to vector<8x1xf32>
    %601 = arith.mulf %600, %596 : vector<8x1xf32>
    %602 = arith.addf %582, %601 : vector<8x1xf32>
    %603 = vector.broadcast %3 : f32 to vector<8x14xf32>
    %604 = arith.mulf %603, %538 : vector<8x14xf32>
    %605 = vector.broadcast %14 : f32 to vector<8x14xf32>
    %606 = arith.mulf %605, %539 : vector<8x14xf32>
    %607 = arith.addf %604, %606 : vector<8x14xf32>
    %608 = vector.broadcast %25 : f32 to vector<8x14xf32>
    %609 = arith.mulf %608, %540 : vector<8x14xf32>
    %610 = arith.addf %607, %609 : vector<8x14xf32>
    %cst_170 = arith.constant dense<0xFF800000> : vector<8xf32>
    %611 = vector.multi_reduction <maximumf>, %610, %cst_170 [1] : vector<8x14xf32> to vector<8xf32>
    %612 = vector.shape_cast %611 : vector<8xf32> to vector<8x1xf32>
    %613 = vector.broadcast %36 : f32 to vector<8x1xf32>
    %614 = arith.addf %612, %613 : vector<8x1xf32>
    %cst_171 = arith.constant 0.000000e+00 : f32
    %615 = vector.broadcast %cst_171 : f32 to vector<8x1xf32>
    %616 = arith.maximumf %614, %615 : vector<8x1xf32>
    %617 = vector.broadcast %47 : f32 to vector<8x1xf32>
    %618 = arith.mulf %617, %616 : vector<8x1xf32>
    %619 = arith.addf %599, %618 : vector<8x1xf32>
    %620 = vector.broadcast %58 : f32 to vector<8x1xf32>
    %621 = arith.mulf %620, %616 : vector<8x1xf32>
    %622 = arith.addf %602, %621 : vector<8x1xf32>
    %623 = vector.broadcast %4 : f32 to vector<8x14xf32>
    %624 = arith.mulf %623, %538 : vector<8x14xf32>
    %625 = vector.broadcast %15 : f32 to vector<8x14xf32>
    %626 = arith.mulf %625, %539 : vector<8x14xf32>
    %627 = arith.addf %624, %626 : vector<8x14xf32>
    %628 = vector.broadcast %26 : f32 to vector<8x14xf32>
    %629 = arith.mulf %628, %540 : vector<8x14xf32>
    %630 = arith.addf %627, %629 : vector<8x14xf32>
    %cst_172 = arith.constant dense<0xFF800000> : vector<8xf32>
    %631 = vector.multi_reduction <maximumf>, %630, %cst_172 [1] : vector<8x14xf32> to vector<8xf32>
    %632 = vector.shape_cast %631 : vector<8xf32> to vector<8x1xf32>
    %633 = vector.broadcast %37 : f32 to vector<8x1xf32>
    %634 = arith.addf %632, %633 : vector<8x1xf32>
    %cst_173 = arith.constant 0.000000e+00 : f32
    %635 = vector.broadcast %cst_173 : f32 to vector<8x1xf32>
    %636 = arith.maximumf %634, %635 : vector<8x1xf32>
    %637 = vector.broadcast %48 : f32 to vector<8x1xf32>
    %638 = arith.mulf %637, %636 : vector<8x1xf32>
    %639 = arith.addf %619, %638 : vector<8x1xf32>
    %640 = vector.broadcast %59 : f32 to vector<8x1xf32>
    %641 = arith.mulf %640, %636 : vector<8x1xf32>
    %642 = arith.addf %622, %641 : vector<8x1xf32>
    %643 = vector.broadcast %5 : f32 to vector<8x14xf32>
    %644 = arith.mulf %643, %538 : vector<8x14xf32>
    %645 = vector.broadcast %16 : f32 to vector<8x14xf32>
    %646 = arith.mulf %645, %539 : vector<8x14xf32>
    %647 = arith.addf %644, %646 : vector<8x14xf32>
    %648 = vector.broadcast %27 : f32 to vector<8x14xf32>
    %649 = arith.mulf %648, %540 : vector<8x14xf32>
    %650 = arith.addf %647, %649 : vector<8x14xf32>
    %cst_174 = arith.constant dense<0xFF800000> : vector<8xf32>
    %651 = vector.multi_reduction <maximumf>, %650, %cst_174 [1] : vector<8x14xf32> to vector<8xf32>
    %652 = vector.shape_cast %651 : vector<8xf32> to vector<8x1xf32>
    %653 = vector.broadcast %38 : f32 to vector<8x1xf32>
    %654 = arith.addf %652, %653 : vector<8x1xf32>
    %cst_175 = arith.constant 0.000000e+00 : f32
    %655 = vector.broadcast %cst_175 : f32 to vector<8x1xf32>
    %656 = arith.maximumf %654, %655 : vector<8x1xf32>
    %657 = vector.broadcast %49 : f32 to vector<8x1xf32>
    %658 = arith.mulf %657, %656 : vector<8x1xf32>
    %659 = arith.addf %639, %658 : vector<8x1xf32>
    %660 = vector.broadcast %60 : f32 to vector<8x1xf32>
    %661 = arith.mulf %660, %656 : vector<8x1xf32>
    %662 = arith.addf %642, %661 : vector<8x1xf32>
    %663 = vector.broadcast %6 : f32 to vector<8x14xf32>
    %664 = arith.mulf %663, %538 : vector<8x14xf32>
    %665 = vector.broadcast %17 : f32 to vector<8x14xf32>
    %666 = arith.mulf %665, %539 : vector<8x14xf32>
    %667 = arith.addf %664, %666 : vector<8x14xf32>
    %668 = vector.broadcast %28 : f32 to vector<8x14xf32>
    %669 = arith.mulf %668, %540 : vector<8x14xf32>
    %670 = arith.addf %667, %669 : vector<8x14xf32>
    %cst_176 = arith.constant dense<0xFF800000> : vector<8xf32>
    %671 = vector.multi_reduction <maximumf>, %670, %cst_176 [1] : vector<8x14xf32> to vector<8xf32>
    %672 = vector.shape_cast %671 : vector<8xf32> to vector<8x1xf32>
    %673 = vector.broadcast %39 : f32 to vector<8x1xf32>
    %674 = arith.addf %672, %673 : vector<8x1xf32>
    %cst_177 = arith.constant 0.000000e+00 : f32
    %675 = vector.broadcast %cst_177 : f32 to vector<8x1xf32>
    %676 = arith.maximumf %674, %675 : vector<8x1xf32>
    %677 = vector.broadcast %50 : f32 to vector<8x1xf32>
    %678 = arith.mulf %677, %676 : vector<8x1xf32>
    %679 = arith.addf %659, %678 : vector<8x1xf32>
    %680 = vector.broadcast %61 : f32 to vector<8x1xf32>
    %681 = arith.mulf %680, %676 : vector<8x1xf32>
    %682 = arith.addf %662, %681 : vector<8x1xf32>
    %683 = vector.broadcast %7 : f32 to vector<8x14xf32>
    %684 = arith.mulf %683, %538 : vector<8x14xf32>
    %685 = vector.broadcast %18 : f32 to vector<8x14xf32>
    %686 = arith.mulf %685, %539 : vector<8x14xf32>
    %687 = arith.addf %684, %686 : vector<8x14xf32>
    %688 = vector.broadcast %29 : f32 to vector<8x14xf32>
    %689 = arith.mulf %688, %540 : vector<8x14xf32>
    %690 = arith.addf %687, %689 : vector<8x14xf32>
    %cst_178 = arith.constant dense<0xFF800000> : vector<8xf32>
    %691 = vector.multi_reduction <maximumf>, %690, %cst_178 [1] : vector<8x14xf32> to vector<8xf32>
    %692 = vector.shape_cast %691 : vector<8xf32> to vector<8x1xf32>
    %693 = vector.broadcast %40 : f32 to vector<8x1xf32>
    %694 = arith.addf %692, %693 : vector<8x1xf32>
    %cst_179 = arith.constant 0.000000e+00 : f32
    %695 = vector.broadcast %cst_179 : f32 to vector<8x1xf32>
    %696 = arith.maximumf %694, %695 : vector<8x1xf32>
    %697 = vector.broadcast %51 : f32 to vector<8x1xf32>
    %698 = arith.mulf %697, %696 : vector<8x1xf32>
    %699 = arith.addf %679, %698 : vector<8x1xf32>
    %700 = vector.broadcast %62 : f32 to vector<8x1xf32>
    %701 = arith.mulf %700, %696 : vector<8x1xf32>
    %702 = arith.addf %682, %701 : vector<8x1xf32>
    %703 = vector.broadcast %8 : f32 to vector<8x14xf32>
    %704 = arith.mulf %703, %538 : vector<8x14xf32>
    %705 = vector.broadcast %19 : f32 to vector<8x14xf32>
    %706 = arith.mulf %705, %539 : vector<8x14xf32>
    %707 = arith.addf %704, %706 : vector<8x14xf32>
    %708 = vector.broadcast %30 : f32 to vector<8x14xf32>
    %709 = arith.mulf %708, %540 : vector<8x14xf32>
    %710 = arith.addf %707, %709 : vector<8x14xf32>
    %cst_180 = arith.constant dense<0xFF800000> : vector<8xf32>
    %711 = vector.multi_reduction <maximumf>, %710, %cst_180 [1] : vector<8x14xf32> to vector<8xf32>
    %712 = vector.shape_cast %711 : vector<8xf32> to vector<8x1xf32>
    %713 = vector.broadcast %41 : f32 to vector<8x1xf32>
    %714 = arith.addf %712, %713 : vector<8x1xf32>
    %cst_181 = arith.constant 0.000000e+00 : f32
    %715 = vector.broadcast %cst_181 : f32 to vector<8x1xf32>
    %716 = arith.maximumf %714, %715 : vector<8x1xf32>
    %717 = vector.broadcast %52 : f32 to vector<8x1xf32>
    %718 = arith.mulf %717, %716 : vector<8x1xf32>
    %719 = arith.addf %699, %718 : vector<8x1xf32>
    %720 = vector.broadcast %63 : f32 to vector<8x1xf32>
    %721 = arith.mulf %720, %716 : vector<8x1xf32>
    %722 = arith.addf %702, %721 : vector<8x1xf32>
    %723 = vector.broadcast %9 : f32 to vector<8x14xf32>
    %724 = arith.mulf %723, %538 : vector<8x14xf32>
    %725 = vector.broadcast %20 : f32 to vector<8x14xf32>
    %726 = arith.mulf %725, %539 : vector<8x14xf32>
    %727 = arith.addf %724, %726 : vector<8x14xf32>
    %728 = vector.broadcast %31 : f32 to vector<8x14xf32>
    %729 = arith.mulf %728, %540 : vector<8x14xf32>
    %730 = arith.addf %727, %729 : vector<8x14xf32>
    %cst_182 = arith.constant dense<0xFF800000> : vector<8xf32>
    %731 = vector.multi_reduction <maximumf>, %730, %cst_182 [1] : vector<8x14xf32> to vector<8xf32>
    %732 = vector.shape_cast %731 : vector<8xf32> to vector<8x1xf32>
    %733 = vector.broadcast %42 : f32 to vector<8x1xf32>
    %734 = arith.addf %732, %733 : vector<8x1xf32>
    %cst_183 = arith.constant 0.000000e+00 : f32
    %735 = vector.broadcast %cst_183 : f32 to vector<8x1xf32>
    %736 = arith.maximumf %734, %735 : vector<8x1xf32>
    %737 = vector.broadcast %53 : f32 to vector<8x1xf32>
    %738 = arith.mulf %737, %736 : vector<8x1xf32>
    %739 = arith.addf %719, %738 : vector<8x1xf32>
    %740 = vector.broadcast %64 : f32 to vector<8x1xf32>
    %741 = arith.mulf %740, %736 : vector<8x1xf32>
    %742 = arith.addf %722, %741 : vector<8x1xf32>
    %743 = vector.broadcast %10 : f32 to vector<8x14xf32>
    %744 = arith.mulf %743, %538 : vector<8x14xf32>
    %745 = vector.broadcast %21 : f32 to vector<8x14xf32>
    %746 = arith.mulf %745, %539 : vector<8x14xf32>
    %747 = arith.addf %744, %746 : vector<8x14xf32>
    %748 = vector.broadcast %32 : f32 to vector<8x14xf32>
    %749 = arith.mulf %748, %540 : vector<8x14xf32>
    %750 = arith.addf %747, %749 : vector<8x14xf32>
    %cst_184 = arith.constant dense<0xFF800000> : vector<8xf32>
    %751 = vector.multi_reduction <maximumf>, %750, %cst_184 [1] : vector<8x14xf32> to vector<8xf32>
    %752 = vector.shape_cast %751 : vector<8xf32> to vector<8x1xf32>
    %753 = vector.broadcast %43 : f32 to vector<8x1xf32>
    %754 = arith.addf %752, %753 : vector<8x1xf32>
    %cst_185 = arith.constant 0.000000e+00 : f32
    %755 = vector.broadcast %cst_185 : f32 to vector<8x1xf32>
    %756 = arith.maximumf %754, %755 : vector<8x1xf32>
    %757 = vector.broadcast %54 : f32 to vector<8x1xf32>
    %758 = arith.mulf %757, %756 : vector<8x1xf32>
    %759 = arith.addf %739, %758 : vector<8x1xf32>
    %760 = vector.broadcast %65 : f32 to vector<8x1xf32>
    %761 = arith.mulf %760, %756 : vector<8x1xf32>
    %762 = arith.addf %742, %761 : vector<8x1xf32>
    %763 = arith.index_cast %535 : i32 to index
    %c0_186 = arith.constant 0 : index
    %764 = vector.load %arg6[%763, %c0_186] : memref<24x2xf32, #tpu.memory_space<vmem>>, vector<8x1xf32>
    tpu.vector_store %arg6[%763, %c0_186], %759 {strides = array<i32>} : memref<24x2xf32, #tpu.memory_space<vmem>>, vector<8x1xf32>,
    %765 = arith.index_cast %535 : i32 to index
    %c1_187 = arith.constant 1 : index
    %766 = vector.load %arg6[%765, %c1_187] : memref<24x2xf32, #tpu.memory_space<vmem>>, vector<8x1xf32>
    tpu.vector_store %arg6[%765, %c1_187], %762 {strides = array<i32>} : memref<24x2xf32, #tpu.memory_space<vmem>>, vector<8x1xf32>,
    %c3_i32 = arith.constant 3 : i32
    return
  }
  func.func @transform_0(%arg0: i32) -> (i32, i32) {
    %c0_i32 = arith.constant 0 : i32
    %c0_i32_0 = arith.constant 0 : i32
    return %arg0, %c0_i32 : i32, i32
  }
  func.func @transform_1(%arg0: i32) -> (i32, i32) {
    %c0_i32 = arith.constant 0 : i32
    %c0_i32_0 = arith.constant 0 : i32
    %c0_i32_1 = arith.constant 0 : i32
    return %c0_i32, %c0_i32_0 : i32, i32
  }
  func.func @transform_2(%arg0: i32) -> i32 {
    %c0_i32 = arith.constant 0 : i32
    %c0_i32_0 = arith.constant 0 : i32
    return %c0_i32 : i32
  }
  func.func @transform_3(%arg0: i32) -> (i32, i32) {
    %c0_i32 = arith.constant 0 : i32
    %c0_i32_0 = arith.constant 0 : i32
    %c0_i32_1 = arith.constant 0 : i32
    return %c0_i32, %c0_i32_0 : i32, i32
  }
  func.func @transform_4(%arg0: i32) -> i32 {
    %c0_i32 = arith.constant 0 : i32
    %c0_i32_0 = arith.constant 0 : i32
    return %c0_i32 : i32
  }
  func.func @transform_5(%arg0: i32) -> (i32, i32) {
    %c0_i32 = arith.constant 0 : i32
    %c0_i32_0 = arith.constant 0 : i32
    return %arg0, %c0_i32 : i32, i32
  }
}

</mosaic_0001>

<llo_original>
// kernel: tpu_custom_call.1
$region0: #{tpu_custom_call.1}
  #allocation0 [shape = 'u32[]', space=smem, size = 0x4, offset = 0x4, fixed_abs, tag = 'smem constant byte address 0x4 - core index']
  #allocation1 [shape = 'u32[144,128]{1,0:T(1,128)}', space=vmem, size = 0x12000, scoped, tag = 'internal scratch']
  %s0 = inlined_call_operand.vmem [shape: f32[24,16], index: 0, kind: input, shape index: {}]
  %s1 = inlined_call_operand.vmem [shape: f32[3,11], index: 1, kind: input, shape index: {}]
  %s2 = inlined_call_operand.vmem [shape: f32[11], index: 2, kind: input, shape index: {}]
  %s3 = inlined_call_operand.vmem [shape: f32[2,11], index: 3, kind: input, shape index: {}]
  %s4 = inlined_call_operand.vmem [shape: f32[2], index: 4, kind: input, shape index: {}]
  %s5 = inlined_call_operand.vmem [shape: f32[24,2], index: 5, kind: output, shape index: {}]
  %s6 = sld [smem:[#allocation0]]
  $region46: #{tpu_custom_call.1} parent=0
    _
  %s8 = ssub.s32 1, %s6
  %s9 = scalar_select 0, %s8, %s6
  $region1: #{tpu_custom_call.1} parent=0
    #allocation2 [shape = 'u8[2048]{0}', space=smem, size = 0x800, scoped, tag = 'input window, operand 1, single buffered']
    #allocation3 [shape = 's32[1]{0}', space=sflag, size = 0x4, scoped, tag = 'scoped memory for tpu_custom_call.1']
    #allocation4 [shape = 'u8[512]{0}', space=smem, size = 0x200, scoped, tag = 'input window, operand 2, single buffered']
    #allocation5 [shape = 's32[1]{0}', space=sflag, size = 0x4, scoped, tag = 'scoped memory for tpu_custom_call.1']
    #allocation6 [shape = 'u8[1024]{0}', space=smem, size = 0x400, scoped, tag = 'input window, operand 3, single buffered']
    #allocation7 [shape = 'u8[512]{0}', space=smem, size = 0x200, scoped, tag = 'input window, operand 4, single buffered']
    #allocation8 [shape = 's32[1]{0}', space=sflag, size = 0x4, scoped, tag = 'scoped memory for tpu_custom_call.1']
    %10 = vsyncpa [#allocation3], 0
    %11 = vsyncpa [#allocation5], 0
    %12 = vsyncpa [#allocation8], 0
    // Predicated region
    $region2: #{tpu_custom_call.1} parent=1 // pred_check
      _
    $region3: #{tpu_custom_call.1} parent=1 // pred_check_branch
      %14 = sbr.rel (0) target = $region5
    $region4: #{tpu_custom_call.1} parent=1 // pred_region
      _
    $region5: #{tpu_custom_call.1} parent=1 // pred_fallthru
      _
    // Predicated region
    $region6: #{tpu_custom_call.1} parent=1 // pred_check
      _
    $region7: #{tpu_custom_call.1} parent=1 // pred_check_branch
      %16 = sbr.rel (0) target = $region9
    $region8: #{tpu_custom_call.1} parent=1 // pred_region
      %s18 = ssub.s32 64, 64
      %19 = vsyncadd [#allocation3], %s18
      %s21 = sshll.u32 %s1, 4
      %s22 = int_to_ptr.vmem [resolvable:$true] %s21
      %24 = dma.vmem_to_smem %s22, 64, [#allocation2], [#allocation3]
    $region9: #{tpu_custom_call.1} parent=1 // pred_fallthru
      _
    // Predicated region
    $region10: #{tpu_custom_call.1} parent=1 // pred_check
      _
    $region11: #{tpu_custom_call.1} parent=1 // pred_check_branch
      %26 = sbr.rel (0) target = $region13
    $region12: #{tpu_custom_call.1} parent=1 // pred_region
      %s28 = ssub.s32 16, 16
      %29 = vsyncadd [#allocation5], %s28
      %s31 = sshll.u32 %s2, 4
      %s32 = int_to_ptr.vmem [resolvable:$true] %s31
      %34 = dma.vmem_to_smem %s32, 16, [#allocation4], [#allocation5]
    $region13: #{tpu_custom_call.1} parent=1 // pred_fallthru
      _
    // Predicated region
    $region14: #{tpu_custom_call.1} parent=1 // pred_check
      _
    $region15: #{tpu_custom_call.1} parent=1 // pred_check_branch
      %36 = sbr.rel (0) target = $region17
    $region16: #{tpu_custom_call.1} parent=1 // pred_region
      %s38 = ssub.s32 32, 32
      %39 = vsyncadd [#allocation5], %s38
      %s41 = sshll.u32 %s3, 4
      %s42 = int_to_ptr.vmem [resolvable:$true] %s41
      %44 = dma.vmem_to_smem %s42, 32, [#allocation6], [#allocation5]
    $region17: #{tpu_custom_call.1} parent=1 // pred_fallthru
      _
    // Predicated region
    $region18: #{tpu_custom_call.1} parent=1 // pred_check
      _
    $region19: #{tpu_custom_call.1} parent=1 // pred_check_branch
      %46 = sbr.rel (0) target = $region21
    $region20: #{tpu_custom_call.1} parent=1 // pred_region
      %s48 = ssub.s32 16, 16
      %49 = vsyncadd [#allocation8], %s48
      %s51 = sshll.u32 %s4, 4
      %s52 = int_to_ptr.vmem [resolvable:$true] %s51
      %54 = dma.vmem_to_smem %s52, 16, [#allocation7], [#allocation8]
    $region21: #{tpu_custom_call.1} parent=1 // pred_fallthru
      _
    // Predicated region
    $region22: #{tpu_custom_call.1} parent=1 // pred_check
      _
    $region23: #{tpu_custom_call.1} parent=1 // pred_check_branch
      %56 = sbr.rel (0) target = $region25
    $region24: #{tpu_custom_call.1} parent=1 // pred_region
      %57 = dma.done [#allocation3], 64
    $region25: #{tpu_custom_call.1} parent=1 // pred_fallthru
      _
    // Predicated region
    $region26: #{tpu_custom_call.1} parent=1 // pred_check
      _
    $region27: #{tpu_custom_call.1} parent=1 // pred_check_branch
      %59 = sbr.rel (0) target = $region29
    $region28: #{tpu_custom_call.1} parent=1 // pred_region
      %60 = dma.done [#allocation5], 16
    $region29: #{tpu_custom_call.1} parent=1 // pred_fallthru
      _
    // Predicated region
    $region30: #{tpu_custom_call.1} parent=1 // pred_check
      _
    $region31: #{tpu_custom_call.1} parent=1 // pred_check_branch
      %62 = sbr.rel (0) target = $region33
    $region32: #{tpu_custom_call.1} parent=1 // pred_region
      %63 = dma.done [#allocation5], 32
    $region33: #{tpu_custom_call.1} parent=1 // pred_fallthru
      _
    // Predicated region
    $region34: #{tpu_custom_call.1} parent=1 // pred_check
      _
    $region35: #{tpu_custom_call.1} parent=1 // pred_check_branch
      %65 = sbr.rel (0) target = $region37
    $region36: #{tpu_custom_call.1} parent=1 // pred_region
      %66 = dma.done [#allocation8], 16
    $region37: #{tpu_custom_call.1} parent=1 // pred_fallthru
      _
    %67 = sfence
    %s68 = sld [smem:[#allocation2]]
    %s69 = sld [smem:[#allocation2 + $0x1]]
    %s70 = sld [smem:[#allocation2 + $0x2]]
    %s71 = sld [smem:[#allocation2 + $0x3]]
    %s72 = sld [smem:[#allocation2 + $0x4]]
    %s73 = sld [smem:[#allocation2 + $0x5]]
    %s74 = sld [smem:[#allocation2 + $0x6]]
    %s75 = sld [smem:[#allocation2 + $0x7]]
    %s76 = sld [smem:[#allocation2 + $0x8]]
    %s77 = sld [smem:[#allocation2 + $0x9]]
    %s78 = sld [smem:[#allocation2 + $0xa]]
    %s79 = sld [smem:[#allocation2 + $0x80]]
    %s80 = sld [smem:[#allocation2 + $0x81]]
    %s81 = sld [smem:[#allocation2 + $0x82]]
    %s82 = sld [smem:[#allocation2 + $0x83]]
    %s83 = sld [smem:[#allocation2 + $0x84]]
    %s84 = sld [smem:[#allocation2 + $0x85]]
    %s85 = sld [smem:[#allocation2 + $0x86]]
    %s86 = sld [smem:[#allocation2 + $0x87]]
    %s87 = sld [smem:[#allocation2 + $0x88]]
    %s88 = sld [smem:[#allocation2 + $0x89]]
    %s89 = sld [smem:[#allocation2 + $0x8a]]
    %s90 = sld [smem:[#allocation2 + $0x100]]
    %s91 = sld [smem:[#allocation2 + $0x101]]
    %s92 = sld [smem:[#allocation2 + $0x102]]
    %s93 = sld [smem:[#allocation2 + $0x103]]
    %s94 = sld [smem:[#allocation2 + $0x104]]
    %s95 = sld [smem:[#allocation2 + $0x105]]
    %s96 = sld [smem:[#allocation2 + $0x106]]
    %s97 = sld [smem:[#allocation2 + $0x107]]
    %s98 = sld [smem:[#allocation2 + $0x108]]
    %s99 = sld [smem:[#allocation2 + $0x109]]
    %s100 = sld [smem:[#allocation2 + $0x10a]]
    %s101 = sld [smem:[#allocation4]]
    %s102 = sld [smem:[#allocation4 + $0x1]]
    %s103 = sld [smem:[#allocation4 + $0x2]]
    %s104 = sld [smem:[#allocation4 + $0x3]]
    %s105 = sld [smem:[#allocation4 + $0x4]]
    %s106 = sld [smem:[#allocation4 + $0x5]]
    %s107 = sld [smem:[#allocation4 + $0x6]]
    %s108 = sld [smem:[#allocation4 + $0x7]]
    %s109 = sld [smem:[#allocation4 + $0x8]]
    %s110 = sld [smem:[#allocation4 + $0x9]]
    %s111 = sld [smem:[#allocation4 + $0xa]]
    %s112 = sld [smem:[#allocation6]]
    %s113 = sld [smem:[#allocation6 + $0x1]]
    %s114 = sld [smem:[#allocation6 + $0x2]]
    %s115 = sld [smem:[#allocation6 + $0x3]]
    %s116 = sld [smem:[#allocation6 + $0x4]]
    %s117 = sld [smem:[#allocation6 + $0x5]]
    %s118 = sld [smem:[#allocation6 + $0x6]]
    %s119 = sld [smem:[#allocation6 + $0x7]]
    %s120 = sld [smem:[#allocation6 + $0x8]]
    %s121 = sld [smem:[#allocation6 + $0x9]]
    %s122 = sld [smem:[#allocation6 + $0xa]]
    %s123 = sld [smem:[#allocation6 + $0x80]]
    %s124 = sld [smem:[#allocation6 + $0x81]]
    %s125 = sld [smem:[#allocation6 + $0x82]]
    %s126 = sld [smem:[#allocation6 + $0x83]]
    %s127 = sld [smem:[#allocation6 + $0x84]]
    %s128 = sld [smem:[#allocation6 + $0x85]]
    %s129 = sld [smem:[#allocation6 + $0x86]]
    %s130 = sld [smem:[#allocation6 + $0x87]]
    %s131 = sld [smem:[#allocation6 + $0x88]]
    %s132 = sld [smem:[#allocation6 + $0x89]]
    %s133 = sld [smem:[#allocation6 + $0x8a]]
    %s134 = sld [smem:[#allocation7]]
    %s135 = sld [smem:[#allocation7 + $0x1]]
    %v136 = vld [vmem:[%s0] sm:$0xff]
    %v137 = vstv %s134
    %v138 = vstv %s135
    %v139 = vstv %s68
    %v140 = vmul.f32 %v139, %v136
    %v141 = vstv %s79
    %v142 = vmul.f32 %v141, %v136
    %144 = vrot.lane.b32.xlu0 %v142, 127
    %v145 = vpop.permute.xlu0 %144
    %v147 = vadd.f32 %v140, %v145
    %v148 = vstv %s90
    %v149 = vmul.f32 %v148, %v136
    %151 = vrot.lane.b32.xlu0 %v149, 126
    %v152 = vpop.permute.xlu0 %151
    %v154 = vadd.f32 %v147, %v152
    %vm155 = vcmask 113664
    %v156 = vsel %vm155, %v154, -inf
    %157 = vmax.xlane.f32.xlu0 %v156
    %v158 = vpop.xlane.xlu0 %157
    %v159 = vstv %s101
    %v160 = vadd.f32 %v158, %v159
    %v161 = vmax.f32 %v160, 0.0
    %v162 = vstv %s112
    %v163 = vmul.f32 %v162, %v161
    %v164 = vadd.f32 %v137, %v163
    %v165 = vstv %s123
    %v166 = vmul.f32 %v165, %v161
    %v167 = vadd.f32 %v138, %v166
    %v168 = vstv %s69
    %v169 = vmul.f32 %v168, %v136
    %v170 = vstv %s80
    %v171 = vmul.f32 %v170, %v136
    %173 = vrot.lane.b32.xlu0 %v171, 127
    %v174 = vpop.permute.xlu0 %173
    %v176 = vadd.f32 %v169, %v174
    %v177 = vstv %s91
    %v178 = vmul.f32 %v177, %v136
    %180 = vrot.lane.b32.xlu0 %v178, 126
    %v181 = vpop.permute.xlu0 %180
    %v183 = vadd.f32 %v176, %v181
    %v184 = vsel %vm155, %v183, -inf
    %185 = vmax.xlane.f32.xlu0 %v184
    %v186 = vpop.xlane.xlu0 %185
    %v187 = vstv %s102
    %v188 = vadd.f32 %v186, %v187
    %v189 = vmax.f32 %v188, 0.0
    %v190 = vstv %s113
    %v191 = vmul.f32 %v190, %v189
    %v192 = vadd.f32 %v164, %v191
    %v193 = vstv %s124
    %v194 = vmul.f32 %v193, %v189
    %v195 = vadd.f32 %v167, %v194
    %v196 = vstv %s70
    %v197 = vmul.f32 %v196, %v136
    %v198 = vstv %s81
    %v199 = vmul.f32 %v198, %v136
    %201 = vrot.lane.b32.xlu0 %v199, 127
    %v202 = vpop.permute.xlu0 %201
    %v204 = vadd.f32 %v197, %v202
    %v205 = vstv %s92
    %v206 = vmul.f32 %v205, %v136
    %208 = vrot.lane.b32.xlu0 %v206, 126
    %v209 = vpop.permute.xlu0 %208
    %v211 = vadd.f32 %v204, %v209
    %v212 = vsel %vm155, %v211, -inf
    %213 = vmax.xlane.f32.xlu0 %v212
    %v214 = vpop.xlane.xlu0 %213
    %v215 = vstv %s103
    %v216 = vadd.f32 %v214, %v215
    %v217 = vmax.f32 %v216, 0.0
    %v218 = vstv %s114
    %v219 = vmul.f32 %v218, %v217
    %v220 = vadd.f32 %v192, %v219
    %v221 = vstv %s125
    %v222 = vmul.f32 %v221, %v217
    %v223 = vadd.f32 %v195, %v222
    %v224 = vstv %s71
    %v225 = vmul.f32 %v224, %v136
    %v226 = vstv %s82
    %v227 = vmul.f32 %v226, %v136
    %229 = vrot.lane.b32.xlu0 %v227, 127
    %v230 = vpop.permute.xlu0 %229
    %v232 = vadd.f32 %v225, %v230
    %v233 = vstv %s93
    %v234 = vmul.f32 %v233, %v136
    %236 = vrot.lane.b32.xlu0 %v234, 126
    %v237 = vpop.permute.xlu0 %236
    %v239 = vadd.f32 %v232, %v237
    %v240 = vsel %vm155, %v239, -inf
    %241 = vmax.xlane.f32.xlu0 %v240
    %v242 = vpop.xlane.xlu0 %241
    %v243 = vstv %s104
    %v244 = vadd.f32 %v242, %v243
    %v245 = vmax.f32 %v244, 0.0
    %v246 = vstv %s115
    %v247 = vmul.f32 %v246, %v245
    %v248 = vadd.f32 %v220, %v247
    %v249 = vstv %s126
    %v250 = vmul.f32 %v249, %v245
    %v251 = vadd.f32 %v223, %v250
    %v252 = vstv %s72
    %v253 = vmul.f32 %v252, %v136
    %v254 = vstv %s83
    %v255 = vmul.f32 %v254, %v136
    %257 = vrot.lane.b32.xlu0 %v255, 127
    %v258 = vpop.permute.xlu0 %257
    %v260 = vadd.f32 %v253, %v258
    %v261 = vstv %s94
    %v262 = vmul.f32 %v261, %v136
    %264 = vrot.lane.b32.xlu0 %v262, 126
    %v265 = vpop.permute.xlu0 %264
    %v267 = vadd.f32 %v260, %v265
    %v268 = vsel %vm155, %v267, -inf
    %269 = vmax.xlane.f32.xlu0 %v268
    %v270 = vpop.xlane.xlu0 %269
    %v271 = vstv %s105
    %v272 = vadd.f32 %v270, %v271
    %v273 = vmax.f32 %v272, 0.0
    %v274 = vstv %s116
    %v275 = vmul.f32 %v274, %v273
    %v276 = vadd.f32 %v248, %v275
    %v277 = vstv %s127
    %v278 = vmul.f32 %v277, %v273
    %v279 = vadd.f32 %v251, %v278
    %v280 = vstv %s73
    %v281 = vmul.f32 %v280, %v136
    %v282 = vstv %s84
    %v283 = vmul.f32 %v282, %v136
    %285 = vrot.lane.b32.xlu0 %v283, 127
    %v286 = vpop.permute.xlu0 %285
    %v288 = vadd.f32 %v281, %v286
    %v289 = vstv %s95
    %v290 = vmul.f32 %v289, %v136
    %292 = vrot.lane.b32.xlu0 %v290, 126
    %v293 = vpop.permute.xlu0 %292
    %v295 = vadd.f32 %v288, %v293
    %v296 = vsel %vm155, %v295, -inf
    %297 = vmax.xlane.f32.xlu0 %v296
    %v298 = vpop.xlane.xlu0 %297
    %v299 = vstv %s106
    %v300 = vadd.f32 %v298, %v299
    %v301 = vmax.f32 %v300, 0.0
    %v302 = vstv %s117
    %v303 = vmul.f32 %v302, %v301
    %v304 = vadd.f32 %v276, %v303
    %v305 = vstv %s128
    %v306 = vmul.f32 %v305, %v301
    %v307 = vadd.f32 %v279, %v306
    %v308 = vstv %s74
    %v309 = vmul.f32 %v308, %v136
    %v310 = vstv %s85
    %v311 = vmul.f32 %v310, %v136
    %313 = vrot.lane.b32.xlu0 %v311, 127
    %v314 = vpop.permute.xlu0 %313
    %v316 = vadd.f32 %v309, %v314
    %v317 = vstv %s96
    %v318 = vmul.f32 %v317, %v136
    %320 = vrot.lane.b32.xlu0 %v318, 126
    %v321 = vpop.permute.xlu0 %320
    %v323 = vadd.f32 %v316, %v321
    %v324 = vsel %vm155, %v323, -inf
    %325 = vmax.xlane.f32.xlu0 %v324
    %v326 = vpop.xlane.xlu0 %325
    %v327 = vstv %s107
    %v328 = vadd.f32 %v326, %v327
    %v329 = vmax.f32 %v328, 0.0
    %v330 = vstv %s118
    %v331 = vmul.f32 %v330, %v329
    %v332 = vadd.f32 %v304, %v331
    %v333 = vstv %s129
    %v334 = vmul.f32 %v333, %v329
    %v335 = vadd.f32 %v307, %v334
    %v336 = vstv %s75
    %v337 = vmul.f32 %v336, %v136
    %v338 = vstv %s86
    %v339 = vmul.f32 %v338, %v136
    %341 = vrot.lane.b32.xlu0 %v339, 127
    %v342 = vpop.permute.xlu0 %341
    %v344 = vadd.f32 %v337, %v342
    %v345 = vstv %s97
    %v346 = vmul.f32 %v345, %v136
    %348 = vrot.lane.b32.xlu0 %v346, 126
    %v349 = vpop.permute.xlu0 %348
    %v351 = vadd.f32 %v344, %v349
    %v352 = vsel %vm155, %v351, -inf
    %353 = vmax.xlane.f32.xlu0 %v352
    %v354 = vpop.xlane.xlu0 %353
    %v355 = vstv %s108
    %v356 = vadd.f32 %v354, %v355
    %v357 = vmax.f32 %v356, 0.0
    %v358 = vstv %s119
    %v359 = vmul.f32 %v358, %v357
    %v360 = vadd.f32 %v332, %v359
    %v361 = vstv %s130
    %v362 = vmul.f32 %v361, %v357
    %v363 = vadd.f32 %v335, %v362
    %v364 = vstv %s76
    %v365 = vmul.f32 %v364, %v136
    %v366 = vstv %s87
    %v367 = vmul.f32 %v366, %v136
    %369 = vrot.lane.b32.xlu0 %v367, 127
    %v370 = vpop.permute.xlu0 %369
    %v372 = vadd.f32 %v365, %v370
    %v373 = vstv %s98
    %v374 = vmul.f32 %v373, %v136
    %376 = vrot.lane.b32.xlu0 %v374, 126
    %v377 = vpop.permute.xlu0 %376
    %v379 = vadd.f32 %v372, %v377
    %v380 = vsel %vm155, %v379, -inf
    %381 = vmax.xlane.f32.xlu0 %v380
    %v382 = vpop.xlane.xlu0 %381
    %v383 = vstv %s109
    %v384 = vadd.f32 %v382, %v383
    %v385 = vmax.f32 %v384, 0.0
    %v386 = vstv %s120
    %v387 = vmul.f32 %v386, %v385
    %v388 = vadd.f32 %v360, %v387
    %v389 = vstv %s131
    %v390 = vmul.f32 %v389, %v385
    %v391 = vadd.f32 %v363, %v390
    %v392 = vstv %s77
    %v393 = vmul.f32 %v392, %v136
    %v394 = vstv %s88
    %v395 = vmul.f32 %v394, %v136
    %397 = vrot.lane.b32.xlu0 %v395, 127
    %v398 = vpop.permute.xlu0 %397
    %v400 = vadd.f32 %v393, %v398
    %v401 = vstv %s99
    %v402 = vmul.f32 %v401, %v136
    %404 = vrot.lane.b32.xlu0 %v402, 126
    %v405 = vpop.permute.xlu0 %404
    %v407 = vadd.f32 %v400, %v405
    %v408 = vsel %vm155, %v407, -inf
    %409 = vmax.xlane.f32.xlu0 %v408
    %v410 = vpop.xlane.xlu0 %409
    %v411 = vstv %s110
    %v412 = vadd.f32 %v410, %v411
    %v413 = vmax.f32 %v412, 0.0
    %v414 = vstv %s121
    %v415 = vmul.f32 %v414, %v413
    %v416 = vadd.f32 %v388, %v415
    %v417 = vstv %s132
    %v418 = vmul.f32 %v417, %v413
    %v419 = vadd.f32 %v391, %v418
    %v420 = vstv %s78
    %v421 = vmul.f32 %v420, %v136
    %v422 = vstv %s89
    %v423 = vmul.f32 %v422, %v136
    %425 = vrot.lane.b32.xlu0 %v423, 127
    %v426 = vpop.permute.xlu0 %425
    %v428 = vadd.f32 %v421, %v426
    %v429 = vstv %s100
    %v430 = vmul.f32 %v429, %v136
    %432 = vrot.lane.b32.xlu0 %v430, 126
    %v433 = vpop.permute.xlu0 %432
    %v435 = vadd.f32 %v428, %v433
    %v436 = vsel %vm155, %v435, -inf
    %437 = vmax.xlane.f32.xlu0 %v436
    %v438 = vpop.xlane.xlu0 %437
    %v439 = vstv %s111
    %v440 = vadd.f32 %v438, %v439
    %v441 = vmax.f32 %v440, 0.0
    %v442 = vstv %s122
    %v443 = vmul.f32 %v442, %v441
    %v444 = vadd.f32 %v416, %v443
    %v445 = vstv %s133
    %v446 = vmul.f32 %v445, %v441
    %v447 = vadd.f32 %v419, %v446
    %vm448 = vcmask 7168
    %449 = vst.msk [vmem:[%s5] sm:$0xff] %vm448, %v444
    %vm450 = vcmask 15368
    %451 = vst.msk [vmem:[%s5] sm:$0xff] %vm450, %v447
    %s452 = scalar_lea.vmem %s0, 8
    %v453 = vld [vmem:[%s452] sm:$0xff]
    %v454 = vmul.f32 %v139, %v453
    %v455 = vmul.f32 %v141, %v453
    %457 = vrot.lane.b32.xlu0 %v455, 127
    %v458 = vpop.permute.xlu0 %457
    %v460 = vadd.f32 %v454, %v458
    %v461 = vmul.f32 %v148, %v453
    %463 = vrot.lane.b32.xlu0 %v461, 126
    %v464 = vpop.permute.xlu0 %463
    %v466 = vadd.f32 %v460, %v464
    %v467 = vsel %vm155, %v466, -inf
    %468 = vmax.xlane.f32.xlu0 %v467
    %v469 = vpop.xlane.xlu0 %468
    %v470 = vadd.f32 %v469, %v159
    %v471 = vmax.f32 %v470, 0.0
    %v472 = vmul.f32 %v162, %v471
    %v473 = vadd.f32 %v137, %v472
    %v474 = vmul.f32 %v165, %v471
    %v475 = vadd.f32 %v138, %v474
    %v476 = vmul.f32 %v168, %v453
    %v477 = vmul.f32 %v170, %v453
    %479 = vrot.lane.b32.xlu0 %v477, 127
    %v480 = vpop.permute.xlu0 %479
    %v482 = vadd.f32 %v476, %v480
    %v483 = vmul.f32 %v177, %v453
    %485 = vrot.lane.b32.xlu0 %v483, 126
    %v486 = vpop.permute.xlu0 %485
    %v488 = vadd.f32 %v482, %v486
    %v489 = vsel %vm155, %v488, -inf
    %490 = vmax.xlane.f32.xlu0 %v489
    %v491 = vpop.xlane.xlu0 %490
    %v492 = vadd.f32 %v491, %v187
    %v493 = vmax.f32 %v492, 0.0
    %v494 = vmul.f32 %v190, %v493
    %v495 = vadd.f32 %v473, %v494
    %v496 = vmul.f32 %v193, %v493
    %v497 = vadd.f32 %v475, %v496
    %v498 = vmul.f32 %v196, %v453
    %v499 = vmul.f32 %v198, %v453
    %501 = vrot.lane.b32.xlu0 %v499, 127
    %v502 = vpop.permute.xlu0 %501
    %v504 = vadd.f32 %v498, %v502
    %v505 = vmul.f32 %v205, %v453
    %507 = vrot.lane.b32.xlu0 %v505, 126
    %v508 = vpop.permute.xlu0 %507
    %v510 = vadd.f32 %v504, %v508
    %v511 = vsel %vm155, %v510, -inf
    %512 = vmax.xlane.f32.xlu0 %v511
    %v513 = vpop.xlane.xlu0 %512
    %v514 = vadd.f32 %v513, %v215
    %v515 = vmax.f32 %v514, 0.0
    %v516 = vmul.f32 %v218, %v515
    %v517 = vadd.f32 %v495, %v516
    %v518 = vmul.f32 %v221, %v515
    %v519 = vadd.f32 %v497, %v518
    %v520 = vmul.f32 %v224, %v453
    %v521 = vmul.f32 %v226, %v453
    %523 = vrot.lane.b32.xlu0 %v521, 127
    %v524 = vpop.permute.xlu0 %523
    %v526 = vadd.f32 %v520, %v524
    %v527 = vmul.f32 %v233, %v453
    %529 = vrot.lane.b32.xlu0 %v527, 126
    %v530 = vpop.permute.xlu0 %529
    %v532 = vadd.f32 %v526, %v530
    %v533 = vsel %vm155, %v532, -inf
    %534 = vmax.xlane.f32.xlu0 %v533
    %v535 = vpop.xlane.xlu0 %534
    %v536 = vadd.f32 %v535, %v243
    %v537 = vmax.f32 %v536, 0.0
    %v538 = vmul.f32 %v246, %v537
    %v539 = vadd.f32 %v517, %v538
    %v540 = vmul.f32 %v249, %v537
    %v541 = vadd.f32 %v519, %v540
    %v542 = vmul.f32 %v252, %v453
    %v543 = vmul.f32 %v254, %v453
    %545 = vrot.lane.b32.xlu0 %v543, 127
    %v546 = vpop.permute.xlu0 %545
    %v548 = vadd.f32 %v542, %v546
    %v549 = vmul.f32 %v261, %v453
    %551 = vrot.lane.b32.xlu0 %v549, 126
    %v552 = vpop.permute.xlu0 %551
    %v554 = vadd.f32 %v548, %v552
    %v555 = vsel %vm155, %v554, -inf
    %556 = vmax.xlane.f32.xlu0 %v555
    %v557 = vpop.xlane.xlu0 %556
    %v558 = vadd.f32 %v557, %v271
    %v559 = vmax.f32 %v558, 0.0
    %v560 = vmul.f32 %v274, %v559
    %v561 = vadd.f32 %v539, %v560
    %v562 = vmul.f32 %v277, %v559
    %v563 = vadd.f32 %v541, %v562
    %v564 = vmul.f32 %v280, %v453
    %v565 = vmul.f32 %v282, %v453
    %567 = vrot.lane.b32.xlu0 %v565, 127
    %v568 = vpop.permute.xlu0 %567
    %v570 = vadd.f32 %v564, %v568
    %v571 = vmul.f32 %v289, %v453
    %573 = vrot.lane.b32.xlu0 %v571, 126
    %v574 = vpop.permute.xlu0 %573
    %v576 = vadd.f32 %v570, %v574
    %v577 = vsel %vm155, %v576, -inf
    %578 = vmax.xlane.f32.xlu0 %v577
    %v579 = vpop.xlane.xlu0 %578
    %v580 = vadd.f32 %v579, %v299
    %v581 = vmax.f32 %v580, 0.0
    %v582 = vmul.f32 %v302, %v581
    %v583 = vadd.f32 %v561, %v582
    %v584 = vmul.f32 %v305, %v581
    %v585 = vadd.f32 %v563, %v584
    %v586 = vmul.f32 %v308, %v453
    %v587 = vmul.f32 %v310, %v453
    %589 = vrot.lane.b32.xlu0 %v587, 127
    %v590 = vpop.permute.xlu0 %589
    %v592 = vadd.f32 %v586, %v590
    %v593 = vmul.f32 %v317, %v453
    %595 = vrot.lane.b32.xlu0 %v593, 126
    %v596 = vpop.permute.xlu0 %595
    %v598 = vadd.f32 %v592, %v596
    %v599 = vsel %vm155, %v598, -inf
    %600 = vmax.xlane.f32.xlu0 %v599
    %v601 = vpop.xlane.xlu0 %600
    %v602 = vadd.f32 %v601, %v327
    %v603 = vmax.f32 %v602, 0.0
    %v604 = vmul.f32 %v330, %v603
    %v605 = vadd.f32 %v583, %v604
    %v606 = vmul.f32 %v333, %v603
    %v607 = vadd.f32 %v585, %v606
    %v608 = vmul.f32 %v336, %v453
    %v609 = vmul.f32 %v338, %v453
    %611 = vrot.lane.b32.xlu0 %v609, 127
    %v612 = vpop.permute.xlu0 %611
    %v614 = vadd.f32 %v608, %v612
    %v615 = vmul.f32 %v345, %v453
    %617 = vrot.lane.b32.xlu0 %v615, 126
    %v618 = vpop.permute.xlu0 %617
    %v620 = vadd.f32 %v614, %v618
    %v621 = vsel %vm155, %v620, -inf
    %622 = vmax.xlane.f32.xlu0 %v621
    %v623 = vpop.xlane.xlu0 %622
    %v624 = vadd.f32 %v623, %v355
    %v625 = vmax.f32 %v624, 0.0
    %v626 = vmul.f32 %v358, %v625
    %v627 = vadd.f32 %v605, %v626
    %v628 = vmul.f32 %v361, %v625
    %v629 = vadd.f32 %v607, %v628
    %v630 = vmul.f32 %v364, %v453
    %v631 = vmul.f32 %v366, %v453
    %633 = vrot.lane.b32.xlu0 %v631, 127
    %v634 = vpop.permute.xlu0 %633
    %v636 = vadd.f32 %v630, %v634
    %v637 = vmul.f32 %v373, %v453
    %639 = vrot.lane.b32.xlu0 %v637, 126
    %v640 = vpop.permute.xlu0 %639
    %v642 = vadd.f32 %v636, %v640
    %v643 = vsel %vm155, %v642, -inf
    %644 = vmax.xlane.f32.xlu0 %v643
    %v645 = vpop.xlane.xlu0 %644
    %v646 = vadd.f32 %v645, %v383
    %v647 = vmax.f32 %v646, 0.0
    %v648 = vmul.f32 %v386, %v647
    %v649 = vadd.f32 %v627, %v648
    %v650 = vmul.f32 %v389, %v647
    %v651 = vadd.f32 %v629, %v650
    %v652 = vmul.f32 %v392, %v453
    %v653 = vmul.f32 %v394, %v453
    %655 = vrot.lane.b32.xlu0 %v653, 127
    %v656 = vpop.permute.xlu0 %655
    %v658 = vadd.f32 %v652, %v656
    %v659 = vmul.f32 %v401, %v453
    %661 = vrot.lane.b32.xlu0 %v659, 126
    %v662 = vpop.permute.xlu0 %661
    %v664 = vadd.f32 %v658, %v662
    %v665 = vsel %vm155, %v664, -inf
    %666 = vmax.xlane.f32.xlu0 %v665
    %v667 = vpop.xlane.xlu0 %666
    %v668 = vadd.f32 %v667, %v411
    %v669 = vmax.f32 %v668, 0.0
    %v670 = vmul.f32 %v414, %v669
    %v671 = vadd.f32 %v649, %v670
    %v672 = vmul.f32 %v417, %v669
    %v673 = vadd.f32 %v651, %v672
    %v674 = vmul.f32 %v420, %v453
    %v675 = vmul.f32 %v422, %v453
    %677 = vrot.lane.b32.xlu0 %v675, 127
    %v678 = vpop.permute.xlu0 %677
    %v680 = vadd.f32 %v674, %v678
    %v681 = vmul.f32 %v429, %v453
    %683 = vrot.lane.b32.xlu0 %v681, 126
    %v684 = vpop.permute.xlu0 %683
    %v686 = vadd.f32 %v680, %v684
    %v687 = vsel %vm155, %v686, -inf
    %688 = vmax.xlane.f32.xlu0 %v687
    %v689 = vpop.xlane.xlu0 %688
    %v690 = vadd.f32 %v689, %v439
    %v691 = vmax.f32 %v690, 0.0
    %v692 = vmul.f32 %v442, %v691
    %v693 = vadd.f32 %v671, %v692
    %v694 = vmul.f32 %v445, %v691
    %v695 = vadd.f32 %v673, %v694
    %s696 = scalar_lea.vmem %s5, 8
    %697 = vst.msk [vmem:[%s696] sm:$0xff] %vm448, %v693
    %698 = vst.msk [vmem:[%s696] sm:$0xff] %vm450, %v695
    %s699 = scalar_lea.vmem %s0, 16
    %v700 = vld [vmem:[%s699] sm:$0xff]
    %v701 = vmul.f32 %v139, %v700
    %v702 = vmul.f32 %v141, %v700
    %704 = vrot.lane.b32.xlu0 %v702, 127
    %v705 = vpop.permute.xlu0 %704
    %v707 = vadd.f32 %v701, %v705
    %v708 = vmul.f32 %v148, %v700
    %710 = vrot.lane.b32.xlu0 %v708, 126
    %v711 = vpop.permute.xlu0 %710
    %v713 = vadd.f32 %v707, %v711
    %v714 = vsel %vm155, %v713, -inf
    %715 = vmax.xlane.f32.xlu0 %v714
    %v716 = vpop.xlane.xlu0 %715
    %v717 = vadd.f32 %v716, %v159
    %v718 = vmax.f32 %v717, 0.0
    %v719 = vmul.f32 %v162, %v718
    %v720 = vadd.f32 %v137, %v719
    %v721 = vmul.f32 %v165, %v718
    %v722 = vadd.f32 %v138, %v721
    %v723 = vmul.f32 %v168, %v700
    %v724 = vmul.f32 %v170, %v700
    %726 = vrot.lane.b32.xlu0 %v724, 127
    %v727 = vpop.permute.xlu0 %726
    %v729 = vadd.f32 %v723, %v727
    %v730 = vmul.f32 %v177, %v700
    %732 = vrot.lane.b32.xlu0 %v730, 126
    %v733 = vpop.permute.xlu0 %732
    %v735 = vadd.f32 %v729, %v733
    %v736 = vsel %vm155, %v735, -inf
    %737 = vmax.xlane.f32.xlu0 %v736
    %v738 = vpop.xlane.xlu0 %737
    %v739 = vadd.f32 %v738, %v187
    %v740 = vmax.f32 %v739, 0.0
    %v741 = vmul.f32 %v190, %v740
    %v742 = vadd.f32 %v720, %v741
    %v743 = vmul.f32 %v193, %v740
    %v744 = vadd.f32 %v722, %v743
    %v745 = vmul.f32 %v196, %v700
    %v746 = vmul.f32 %v198, %v700
    %748 = vrot.lane.b32.xlu0 %v746, 127
    %v749 = vpop.permute.xlu0 %748
    %v751 = vadd.f32 %v745, %v749
    %v752 = vmul.f32 %v205, %v700
    %754 = vrot.lane.b32.xlu0 %v752, 126
    %v755 = vpop.permute.xlu0 %754
    %v757 = vadd.f32 %v751, %v755
    %v758 = vsel %vm155, %v757, -inf
    %759 = vmax.xlane.f32.xlu0 %v758
    %v760 = vpop.xlane.xlu0 %759
    %v761 = vadd.f32 %v760, %v215
    %v762 = vmax.f32 %v761, 0.0
    %v763 = vmul.f32 %v218, %v762
    %v764 = vadd.f32 %v742, %v763
    %v765 = vmul.f32 %v221, %v762
    %v766 = vadd.f32 %v744, %v765
    %v767 = vmul.f32 %v224, %v700
    %v768 = vmul.f32 %v226, %v700
    %770 = vrot.lane.b32.xlu0 %v768, 127
    %v771 = vpop.permute.xlu0 %770
    %v773 = vadd.f32 %v767, %v771
    %v774 = vmul.f32 %v233, %v700
    %776 = vrot.lane.b32.xlu0 %v774, 126
    %v777 = vpop.permute.xlu0 %776
    %v779 = vadd.f32 %v773, %v777
    %v780 = vsel %vm155, %v779, -inf
    %781 = vmax.xlane.f32.xlu0 %v780
    %v782 = vpop.xlane.xlu0 %781
    %v783 = vadd.f32 %v782, %v243
    %v784 = vmax.f32 %v783, 0.0
    %v785 = vmul.f32 %v246, %v784
    %v786 = vadd.f32 %v764, %v785
    %v787 = vmul.f32 %v249, %v784
    %v788 = vadd.f32 %v766, %v787
    %v789 = vmul.f32 %v252, %v700
    %v790 = vmul.f32 %v254, %v700
    %792 = vrot.lane.b32.xlu0 %v790, 127
    %v793 = vpop.permute.xlu0 %792
    %v795 = vadd.f32 %v789, %v793
    %v796 = vmul.f32 %v261, %v700
    %798 = vrot.lane.b32.xlu0 %v796, 126
    %v799 = vpop.permute.xlu0 %798
    %v801 = vadd.f32 %v795, %v799
    %v802 = vsel %vm155, %v801, -inf
    %803 = vmax.xlane.f32.xlu0 %v802
    %v804 = vpop.xlane.xlu0 %803
    %v805 = vadd.f32 %v804, %v271
    %v806 = vmax.f32 %v805, 0.0
    %v807 = vmul.f32 %v274, %v806
    %v808 = vadd.f32 %v786, %v807
    %v809 = vmul.f32 %v277, %v806
    %v810 = vadd.f32 %v788, %v809
    %v811 = vmul.f32 %v280, %v700
    %v812 = vmul.f32 %v282, %v700
    %814 = vrot.lane.b32.xlu0 %v812, 127
    %v815 = vpop.permute.xlu0 %814
    %v817 = vadd.f32 %v811, %v815
    %v818 = vmul.f32 %v289, %v700
    %820 = vrot.lane.b32.xlu0 %v818, 126
    %v821 = vpop.permute.xlu0 %820
    %v823 = vadd.f32 %v817, %v821
    %v824 = vsel %vm155, %v823, -inf
    %825 = vmax.xlane.f32.xlu0 %v824
    %v826 = vpop.xlane.xlu0 %825
    %v827 = vadd.f32 %v826, %v299
    %v828 = vmax.f32 %v827, 0.0
    %v829 = vmul.f32 %v302, %v828
    %v830 = vadd.f32 %v808, %v829
    %v831 = vmul.f32 %v305, %v828
    %v832 = vadd.f32 %v810, %v831
    %v833 = vmul.f32 %v308, %v700
    %v834 = vmul.f32 %v310, %v700
    %836 = vrot.lane.b32.xlu0 %v834, 127
    %v837 = vpop.permute.xlu0 %836
    %v839 = vadd.f32 %v833, %v837
    %v840 = vmul.f32 %v317, %v700
    %842 = vrot.lane.b32.xlu0 %v840, 126
    %v843 = vpop.permute.xlu0 %842
    %v845 = vadd.f32 %v839, %v843
    %v846 = vsel %vm155, %v845, -inf
    %847 = vmax.xlane.f32.xlu0 %v846
    %v848 = vpop.xlane.xlu0 %847
    %v849 = vadd.f32 %v848, %v327
    %v850 = vmax.f32 %v849, 0.0
    %v851 = vmul.f32 %v330, %v850
    %v852 = vadd.f32 %v830, %v851
    %v853 = vmul.f32 %v333, %v850
    %v854 = vadd.f32 %v832, %v853
    %v855 = vmul.f32 %v336, %v700
    %v856 = vmul.f32 %v338, %v700
    %858 = vrot.lane.b32.xlu0 %v856, 127
    %v859 = vpop.permute.xlu0 %858
    %v861 = vadd.f32 %v855, %v859
    %v862 = vmul.f32 %v345, %v700
    %864 = vrot.lane.b32.xlu0 %v862, 126
    %v865 = vpop.permute.xlu0 %864
    %v867 = vadd.f32 %v861, %v865
    %v868 = vsel %vm155, %v867, -inf
    %869 = vmax.xlane.f32.xlu0 %v868
    %v870 = vpop.xlane.xlu0 %869
    %v871 = vadd.f32 %v870, %v355
    %v872 = vmax.f32 %v871, 0.0
    %v873 = vmul.f32 %v358, %v872
    %v874 = vadd.f32 %v852, %v873
    %v875 = vmul.f32 %v361, %v872
    %v876 = vadd.f32 %v854, %v875
    %v877 = vmul.f32 %v364, %v700
    %v878 = vmul.f32 %v366, %v700
    %880 = vrot.lane.b32.xlu0 %v878, 127
    %v881 = vpop.permute.xlu0 %880
    %v883 = vadd.f32 %v877, %v881
    %v884 = vmul.f32 %v373, %v700
    %886 = vrot.lane.b32.xlu0 %v884, 126
    %v887 = vpop.permute.xlu0 %886
    %v889 = vadd.f32 %v883, %v887
    %v890 = vsel %vm155, %v889, -inf
    %891 = vmax.xlane.f32.xlu0 %v890
    %v892 = vpop.xlane.xlu0 %891
    %v893 = vadd.f32 %v892, %v383
    %v894 = vmax.f32 %v893, 0.0
    %v895 = vmul.f32 %v386, %v894
    %v896 = vadd.f32 %v874, %v895
    %v897 = vmul.f32 %v389, %v894
    %v898 = vadd.f32 %v876, %v897
    %v899 = vmul.f32 %v392, %v700
    %v900 = vmul.f32 %v394, %v700
    %902 = vrot.lane.b32.xlu0 %v900, 127
    %v903 = vpop.permute.xlu0 %902
    %v905 = vadd.f32 %v899, %v903
    %v906 = vmul.f32 %v401, %v700
    %908 = vrot.lane.b32.xlu0 %v906, 126
    %v909 = vpop.permute.xlu0 %908
    %v911 = vadd.f32 %v905, %v909
    %v912 = vsel %vm155, %v911, -inf
    %913 = vmax.xlane.f32.xlu0 %v912
    %v914 = vpop.xlane.xlu0 %913
    %v915 = vadd.f32 %v914, %v411
    %v916 = vmax.f32 %v915, 0.0
    %v917 = vmul.f32 %v414, %v916
    %v918 = vadd.f32 %v896, %v917
    %v919 = vmul.f32 %v417, %v916
    %v920 = vadd.f32 %v898, %v919
    %v921 = vmul.f32 %v420, %v700
    %v922 = vmul.f32 %v422, %v700
    %924 = vrot.lane.b32.xlu0 %v922, 127
    %v925 = vpop.permute.xlu0 %924
    %v927 = vadd.f32 %v921, %v925
    %v928 = vmul.f32 %v429, %v700
    %930 = vrot.lane.b32.xlu0 %v928, 126
    %v931 = vpop.permute.xlu0 %930
    %v933 = vadd.f32 %v927, %v931
    %v934 = vsel %vm155, %v933, -inf
    %935 = vmax.xlane.f32.xlu0 %v934
    %v936 = vpop.xlane.xlu0 %935
    %v937 = vadd.f32 %v936, %v439
    %v938 = vmax.f32 %v937, 0.0
    %v939 = vmul.f32 %v442, %v938
    %v940 = vadd.f32 %v918, %v939
    %v941 = vmul.f32 %v445, %v938
    %v942 = vadd.f32 %v920, %v941
    %s943 = scalar_lea.vmem %s5, 16
    %944 = vst.msk [vmem:[%s943] sm:$0xff] %vm448, %v940
    %945 = vst.msk [vmem:[%s943] sm:$0xff] %vm450, %v942
    // Predicated region
    $region38: #{tpu_custom_call.1} parent=1 // pred_check
      _
    $region39: #{tpu_custom_call.1} parent=1 // pred_check_branch
      %947 = sbr.rel (0) target = $region41
    $region40: #{tpu_custom_call.1} parent=1 // pred_region
      _
    $region41: #{tpu_custom_call.1} parent=1 // pred_fallthru
      _
    // Predicated region
    $region42: #{tpu_custom_call.1} parent=1 // pred_check
      _
    $region43: #{tpu_custom_call.1} parent=1 // pred_check_branch
      %949 = sbr.rel (0) target = $region45
    $region44: #{tpu_custom_call.1} parent=1 // pred_region
      _
    $region45: #{tpu_custom_call.1} parent=1 // pred_fallthru
      _
    %950 = vsyncpa [#allocation3], 1
    %951 = vsyncpa [#allocation5], 1
    %952 = vsyncpa [#allocation8], 1

</llo_original>
